<compile_context>
chip_gen: v7x
topology: tpu7x:2x2x1
jax: 0.10.0
libtpu: 0.0.40
codegen_flags: <defaults>
</compile_context>

<pallas_src>
import jax
import jax.numpy as jnp
from jax.experimental import pallas as pl
from jax.experimental.pallas import tpu as pltpu


# ----------------------------------------------------------------------------
# Fused Pallas kernel: all GIN layers + readout tail
# ----------------------------------------------------------------------------
def _fused_gin_kernel(inc_ref, incT_ref, x0_ref, e_ref, coef_ref,
                      w1_ref, b1_ref, w2_ref, b2_ref,
                      pool_ref, fw1_ref, fb1_ref, fw2_ref, fb2_ref,
                      lw_ref, lb_ref,
                      out_ref, x_scr):
    l = pl.program_id(0)

    # Layer 0: load the encoded node features into the resident accumulator.
    @pl.when(l == 0)
    def _init():
        x_scr[...] = x0_ref[...]

    x = x_scr[...]

    # GIN / ptens message passing:
    #   msg_e = edge_attr_e + sum_{v in e} x_v        (node -> edge gather)
    #   agg_v = sum_{e contains v} msg_e              (edge -> node gather)
    #   pre_v = agg_v + (1 + eps - deg_v) * x_v
    msg = e_ref[...] + jnp.dot(inc_ref[...], x, preferred_element_type=jnp.float32)
    pre = (jnp.dot(incT_ref[...], msg, preferred_element_type=jnp.float32)
           + coef_ref[...] * x)

    # node MLP: Linear(no bias, BN scale folded in) + shift + ReLU, twice.
    h1 = jnp.maximum(
        jnp.dot(pre, w1_ref[...], preferred_element_type=jnp.float32) + b1_ref[...],
        0.0)
    x_new = jnp.maximum(
        jnp.dot(h1, w2_ref[...], preferred_element_type=jnp.float32) + b2_ref[...],
        0.0)
    x_scr[...] = x_new

    # Last layer: fused readout (global sum pool + final MLP + output Linear).
    @pl.when(l == pl.num_programs(0) - 1)
    def _readout():
        r = jnp.dot(pool_ref[...], x_new, preferred_element_type=jnp.float32)
        r = jnp.maximum(
            jnp.dot(r, fw1_ref[...], preferred_element_type=jnp.float32) + fb1_ref[...],
            0.0)
        r = jnp.maximum(
            jnp.dot(r, fw2_ref[...], preferred_element_type=jnp.float32) + fb2_ref[...],
            0.0)
        out_ref[...] = (jnp.dot(r, lw_ref[...], preferred_element_type=jnp.float32)
                        + lb_ref[...])


def gin_forward_fused(inc, inc_t, node0, edge_rep, coef,
                      w1s, b1s, w2s, b2s,
                      pool_mat, fw1, fb1, fw2, fb2, lw, lb):
    """One pallas_call for the whole hot path. grid = (num_layers,)."""
    L, H, inner = w1s.shape
    E, N = inc.shape
    G = pool_mat.shape[0]
    D = fw1.shape[1]
    OUT = lw.shape[1]

    const2 = lambda l: (0, 0)       # constant / resident blocks
    per_l3 = lambda l: (l, 0, 0)    # layer-stacked weight blocks

    return pl.pallas_call(
        _fused_gin_kernel,
        out_shape=jax.ShapeDtypeStruct((G, OUT), jnp.float32),
        grid_spec=pltpu.PrefetchScalarGridSpec(
            num_scalar_prefetch=0,
            grid=(L,),
            in_specs=[
                pl.BlockSpec((E, N), const2),                 # inc
                pl.BlockSpec((N, E), const2),                 # inc^T (precomputed)
                pl.BlockSpec((N, H), const2),                 # encoded node features
                pl.BlockSpec((E, H), const2),                 # encoded edge features
                pl.BlockSpec((N, 1), const2),                 # (1 + eps - degree)
                pl.BlockSpec((None, H, inner), per_l3),       # w1 (BN scale folded)
                pl.BlockSpec((None, 1, inner), per_l3),       # shift1
                pl.BlockSpec((None, inner, H), per_l3),       # w2 (BN scale folded)
                pl.BlockSpec((None, 1, H), per_l3),           # shift2
                pl.BlockSpec((G, N), const2),                 # pooling matrix
                pl.BlockSpec((H, D), const2),                 # f_w1 (folded)
                pl.BlockSpec((1, D), const2),                 # f_shift1
                pl.BlockSpec((D, D), const2),                 # f_w2 (folded)
                pl.BlockSpec((1, D), const2),                 # f_shift2
                pl.BlockSpec((D, OUT), const2),               # lin_w
                pl.BlockSpec((1, OUT), const2),               # lin_b
            ],
            out_specs=pl.BlockSpec((G, OUT), const2),
            scratch_shapes=[pltpu.VMEM((N, H), jnp.float32)],  # resident node_rep
        ),
        compiler_params=pltpu.CompilerParams(
            dimension_semantics=("arbitrary",)),
    )(inc, inc_t, node0, edge_rep, coef,
      w1s, b1s, w2s, b2s, pool_mat, fw1, fb1, fw2, fb2, lw, lb)


# ----------------------------------------------------------------------------
# Parameters (deterministic, synthetic)
# ----------------------------------------------------------------------------
_INNER_MLP_MULT = 2


def _fold_bn(gamma, beta, mean, var, eps=1e-5):
    scale = gamma / jnp.sqrt(var + eps)
    shift = beta - mean * scale
    return scale[None, :], shift[None, :]


def _bn_params(key, dim):
    k1, k2 = jax.random.split(key)
    gamma = 1.0 + 0.1 * jax.random.normal(k1, (dim,), jnp.float32)
    beta = 0.1 * jax.random.normal(k2, (dim,), jnp.float32)
    mean = jnp.zeros((dim,), jnp.float32)
    var = jnp.ones((dim,), jnp.float32)
    return _fold_bn(gamma, beta, mean, var)


def init_params(key, in_node, in_edge, hidden, dense, out_dim, num_layers):
    p = {}
    keys = jax.random.split(key, 8 + 4 * num_layers)
    ki = iter(range(len(keys)))

    def nrm(k, shape, fan_in):
        return jax.random.normal(keys[k], shape, jnp.float32) / jnp.sqrt(fan_in)

    # encoders (glue)
    p["node_emb_w"] = nrm(next(ki), (in_node, hidden), in_node)
    p["node_emb_b"] = jnp.zeros((1, hidden), jnp.float32)
    p["edge_emb_w"] = nrm(next(ki), (in_edge, hidden), in_edge)
    p["edge_emb_b"] = jnp.zeros((1, hidden), jnp.float32)

    p["epsilon"] = jnp.float32(0.0)  # torch.Tensor([0.0]) Parameter

    inner = hidden * _INNER_MLP_MULT
    layers = []
    for _ in range(num_layers):
        lyr = {}
        lyr["w1"] = nrm(next(ki), (hidden, inner), hidden)
        lyr["s1"], lyr["b1"] = _bn_params(keys[next(ki)], inner)
        lyr["w2"] = nrm(next(ki), (inner, hidden), inner)
        lyr["s2"], lyr["b2"] = _bn_params(keys[next(ki)], hidden)
        layers.append(lyr)
    p["layers"] = layers

    p["f_w1"] = nrm(next(ki), (hidden, dense), hidden)
    p["f_s1"], p["f_b1"] = _bn_params(keys[next(ki)], dense)
    p["f_w2"] = nrm(next(ki), (dense, dense), dense)
    p["f_s2"], p["f_b2"] = _bn_params(keys[next(ki)], dense)

    p["lin_w"] = nrm(next(ki), (dense, out_dim), dense)
    p["lin_b"] = 0.01 * jax.random.normal(keys[next(ki)], (1, out_dim), jnp.float32)
    return p


# ----------------------------------------------------------------------------
# Model forward (single Pallas hot-path call, JAX glue for encoders/folding)
# ----------------------------------------------------------------------------
def model_forward(params, x, edge_attr, inc, pool_mat, deg):
    # encoders (glue JAX); edge_attr gather onto the edge subgraph layer is the
    # identity for 0th-order ptensors.
    node0 = x @ params["node_emb_w"] + params["node_emb_b"]
    edge_rep = edge_attr @ params["edge_emb_w"] + params["edge_emb_b"]

    coef = (1.0 + params["epsilon"]) - deg  # [N, 1]  ==  (1 + eps - degree)

    # One-time constant folds: BN scale into the preceding Linear weight, and
    # stack per-layer weights so a single pallas_call streams them over grid=(L,).
    w1s = jnp.stack([l["w1"] * l["s1"] for l in params["layers"]])  # [L, H, 2H]
    b1s = jnp.stack([l["b1"] for l in params["layers"]])            # [L, 1, 2H]
    w2s = jnp.stack([l["w2"] * l["s2"] for l in params["layers"]])  # [L, 2H, H]
    b2s = jnp.stack([l["b2"] for l in params["layers"]])            # [L, 1, H]
    fw1 = params["f_w1"] * params["f_s1"]
    fw2 = params["f_w2"] * params["f_s2"]

    return gin_forward_fused(
        inc, inc.T, node0, edge_rep, coef,
        w1s, b1s, w2s, b2s,
        pool_mat, fw1, params["f_b1"], fw2, params["f_b2"],
        params["lin_w"], params["lin_b"])


def reference_forward(params, x, edge_attr, inc, pool_mat, deg):
    """Plain-JAX reference (unfolded BN) for correctness check."""
    node_rep = x @ params["node_emb_w"] + params["node_emb_b"]
    edge_rep = edge_attr @ params["edge_emb_w"] + params["edge_emb_b"]
    coef = (1.0 + params["epsilon"]) - deg
    for lyr in params["layers"]:
        msg = edge_rep + inc @ node_rep
        pre = inc.T @ msg + coef * node_rep
        h1 = jnp.maximum((pre @ lyr["w1"]) * lyr["s1"] + lyr["b1"], 0.0)
        node_rep = jnp.maximum((h1 @ lyr["w2"]) * lyr["s2"] + lyr["b2"], 0.0)
    reps = pool_mat @ node_rep
    reps = jnp.maximum((reps @ params["f_w1"]) * params["f_s1"] + params["f_b1"], 0.0)
    reps = jnp.maximum((reps @ params["f_w2"]) * params["f_s2"] + params["f_b2"], 0.0)
    return reps @ params["lin_w"] + params["lin_b"]


# ----------------------------------------------------------------------------
if __name__ == "__main__":
    key = jax.random.PRNGKey(0)
    k_param, k_x, k_e = jax.random.split(key, 3)

    # --- synthetic batched graph: 2 graphs, 8 nodes each ---
    HIDDEN, DENSE, OUT_DIM, NUM_LAYERS = 128, 128, 8, 2
    IN_NODE, IN_EDGE = 16, 8
    N, E_PAD = 16, 24

    edges = []
    # graph 0: ring over nodes 0..7
    for i in range(8):
        edges.append((i, (i + 1) % 8))
    # graph 1: ring over nodes 8..15 plus 4 chords
    for i in range(8):
        edges.append((8 + i, 8 + (i + 1) % 8))
    for i in range(4):
        edges.append((8 + i, 12 + i))
    E_real = len(edges)  # 20, padded to 24 with zero rows

    inc = jnp.zeros((E_PAD, N), jnp.float32)
    for e, (u, v) in enumerate(edges):
        inc = inc.at[e, u].set(1.0).at[e, v].set(1.0)

    deg = jnp.sum(inc, axis=0).reshape(N, 1)                   # data.degree
    pool_mat = jnp.zeros((2, N), jnp.float32)
    pool_mat = pool_mat.at[0, :8].set(1.0).at[1, 8:].set(1.0)  # data.batch -> sum pool

    x = jax.random.normal(k_x, (N, IN_NODE), jnp.float32)              # data.x
    edge_attr = jax.random.normal(k_e, (E_PAD, IN_EDGE), jnp.float32)  # data.edge_attr

    params = init_params(k_param, IN_NODE, IN_EDGE, HIDDEN, DENSE, OUT_DIM, NUM_LAYERS)

    out = model_forward(params, x, edge_attr, inc, pool_mat, deg)
    out = jax.block_until_ready(out)

    ref = reference_forward(params, x, edge_attr, inc, pool_mat, deg)
    assert out.shape == (2, OUT_DIM)
    assert jnp.allclose(out, ref, atol=1e-3, rtol=1e-3), "mismatch vs JAX reference"

    print("KERNEL_OK")
</pallas_src>

<mosaic_0001>
module attributes {stable_mosaic.version = 11 : i64} {
  func.func @_fused_gin_kernel(%arg0: i32, %arg1: memref<24x16xf32, #tpu.memory_space<vmem>>, %arg2: memref<16x24xf32, #tpu.memory_space<vmem>>, %arg3: memref<16x128xf32, #tpu.memory_space<vmem>>, %arg4: memref<24x128xf32, #tpu.memory_space<vmem>>, %arg5: memref<16x1xf32, #tpu.memory_space<vmem>>, %arg6: memref<1x128x256xf32, #tpu.memory_space<vmem>>, %arg7: memref<1x1x256xf32, #tpu.memory_space<vmem>>, %arg8: memref<1x256x128xf32, #tpu.memory_space<vmem>>, %arg9: memref<1x1x128xf32, #tpu.memory_space<vmem>>, %arg10: memref<2x16xf32, #tpu.memory_space<vmem>>, %arg11: memref<128x128xf32, #tpu.memory_space<vmem>>, %arg12: memref<1x128xf32, #tpu.memory_space<vmem>>, %arg13: memref<128x128xf32, #tpu.memory_space<vmem>>, %arg14: memref<1x128xf32, #tpu.memory_space<vmem>>, %arg15: memref<128x8xf32, #tpu.memory_space<vmem>>, %arg16: memref<1x8xf32, #tpu.memory_space<vmem>>, %arg17: memref<2x8xf32, #tpu.memory_space<vmem>>, %arg18: memref<16x128xf32, #tpu.memory_space<vmem>>) attributes {dimension_semantics = [#tpu.dimension_semantics<arbitrary>], iteration_bounds = array<i64: 2>, scalar_prefetch = 0 : i64, scratch_operands = 1 : i64, tpu.core_type = #tpu.core_type<tc>, window_params = [{pipeline_mode = #tpu.pipeline_mode<synchronous>, transform_indices = @transform_0, window_bounds = array<i64: 24, 16>}, {pipeline_mode = #tpu.pipeline_mode<synchronous>, transform_indices = @transform_1, window_bounds = array<i64: 16, 24>}, {pipeline_mode = #tpu.pipeline_mode<synchronous>, transform_indices = @transform_2, window_bounds = array<i64: 16, 128>}, {pipeline_mode = #tpu.pipeline_mode<synchronous>, transform_indices = @transform_3, window_bounds = array<i64: 24, 128>}, {pipeline_mode = #tpu.pipeline_mode<synchronous>, transform_indices = @transform_4, window_bounds = array<i64: 16, 1>}, {transform_indices = @transform_5, window_bounds = array<i64: 1, 128, 256>}, {transform_indices = @transform_6, window_bounds = array<i64: 1, 1, 256>}, {transform_indices = @transform_7, window_bounds = array<i64: 1, 256, 128>}, {transform_indices = @transform_8, window_bounds = array<i64: 1, 1, 128>}, {pipeline_mode = #tpu.pipeline_mode<synchronous>, transform_indices = @transform_9, window_bounds = array<i64: 2, 16>}, {pipeline_mode = #tpu.pipeline_mode<synchronous>, transform_indices = @transform_10, window_bounds = array<i64: 128, 128>}, {pipeline_mode = #tpu.pipeline_mode<synchronous>, transform_indices = @transform_11, window_bounds = array<i64: 1, 128>}, {pipeline_mode = #tpu.pipeline_mode<synchronous>, transform_indices = @transform_12, window_bounds = array<i64: 128, 128>}, {pipeline_mode = #tpu.pipeline_mode<synchronous>, transform_indices = @transform_13, window_bounds = array<i64: 1, 128>}, {pipeline_mode = #tpu.pipeline_mode<synchronous>, transform_indices = @transform_14, window_bounds = array<i64: 128, 8>}, {pipeline_mode = #tpu.pipeline_mode<synchronous>, transform_indices = @transform_15, window_bounds = array<i64: 1, 8>}, {pipeline_mode = #tpu.pipeline_mode<synchronous>, transform_indices = @transform_16, window_bounds = array<i64: 2, 8>}]} {
    %c0_i32 = arith.constant 0 : i32
    %0 = arith.cmpi eq, %arg0, %c0_i32 : i32
    %1 = arith.extui %0 : i1 to i32
    %c0_i32_0 = arith.constant 0 : i32
    %2 = arith.cmpi ne, %1, %c0_i32_0 : i32
    scf.if %2 {
      %c0_30 = arith.constant 0 : index
      %c0_31 = arith.constant 0 : index
      %36 = vector.load %arg3[%c0_30, %c0_31] : memref<16x128xf32, #tpu.memory_space<vmem>>, vector<16x128xf32>
      %c0_32 = arith.constant 0 : index
      %c0_33 = arith.constant 0 : index
      %37 = vector.load %arg18[%c0_32, %c0_33] : memref<16x128xf32, #tpu.memory_space<vmem>>, vector<16x128xf32>
      tpu.vector_store %arg18[%c0_32, %c0_33], %36 {strides = array<i32>} : memref<16x128xf32, #tpu.memory_space<vmem>>, vector<16x128xf32>,
    } else {
    }
    %c0 = arith.constant 0 : index
    %c0_1 = arith.constant 0 : index
    %3 = vector.load %arg18[%c0, %c0_1] : memref<16x128xf32, #tpu.memory_space<vmem>>, vector<16x128xf32>
    %c0_2 = arith.constant 0 : index
    %c0_3 = arith.constant 0 : index
    %4 = vector.load %arg4[%c0_2, %c0_3] : memref<24x128xf32, #tpu.memory_space<vmem>>, vector<24x128xf32>
    %c0_4 = arith.constant 0 : index
    %c0_5 = arith.constant 0 : index
    %5 = vector.load %arg1[%c0_4, %c0_5] : memref<24x16xf32, #tpu.memory_space<vmem>>, vector<24x16xf32>
    %cst = arith.constant dense<0.000000e+00> : vector<24x128xf32>
    %6 = tpu.matmul %5, %3, %cst {dimension_numbers = #tpu.dot_dimension_numbers<[1], [0], [0], [1], [0, 0, 1, 1], [], []>} : vector<24x16xf32>, vector<16x128xf32>, vector<24x128xf32> -> vector<24x128xf32>
    %7 = arith.addf %4, %6 : vector<24x128xf32>
    %c0_6 = arith.constant 0 : index
    %c0_7 = arith.constant 0 : index
    %8 = vector.load %arg2[%c0_6, %c0_7] : memref<16x24xf32, #tpu.memory_space<vmem>>, vector<16x24xf32>
    %cst_8 = arith.constant dense<0.000000e+00> : vector<16x128xf32>
    %9 = tpu.matmul %8, %7, %cst_8 {dimension_numbers = #tpu.dot_dimension_numbers<[1], [0], [0], [1], [0, 0, 1, 1], [], []>} : vector<16x24xf32>, vector<24x128xf32>, vector<16x128xf32> -> vector<16x128xf32>
    %c0_9 = arith.constant 0 : index
    %c0_10 = arith.constant 0 : index
    %10 = vector.load %arg5[%c0_9, %c0_10] : memref<16x1xf32, #tpu.memory_space<vmem>>, vector<16x1xf32>
    %11 = vector.broadcast %10 : vector<16x1xf32> to vector<16x128xf32>
    %12 = arith.mulf %11, %3 : vector<16x128xf32>
    %13 = arith.addf %9, %12 : vector<16x128xf32>
    %c0_11 = arith.constant 0 : index
    %c0_12 = arith.constant 0 : index
    %c0_13 = arith.constant 0 : index
    %14 = vector.load %arg6[%c0_11, %c0_12, %c0_13] : memref<1x128x256xf32, #tpu.memory_space<vmem>>, vector<1x128x256xf32>
    %15 = vector.shape_cast %14 : vector<1x128x256xf32> to vector<128x256xf32>
    %cst_14 = arith.constant dense<0.000000e+00> : vector<16x256xf32>
    %16 = tpu.matmul %13, %15, %cst_14 {dimension_numbers = #tpu.dot_dimension_numbers<[1], [0], [0], [1], [0, 0, 1, 1], [], []>} : vector<16x128xf32>, vector<128x256xf32>, vector<16x256xf32> -> vector<16x256xf32>
    %c0_15 = arith.constant 0 : index
    %c0_16 = arith.constant 0 : index
    %c0_17 = arith.constant 0 : index
    %17 = vector.load %arg7[%c0_15, %c0_16, %c0_17] : memref<1x1x256xf32, #tpu.memory_space<vmem>>, vector<1x1x256xf32>
    %18 = vector.shape_cast %17 : vector<1x1x256xf32> to vector<1x256xf32>
    %19 = vector.broadcast %18 : vector<1x256xf32> to vector<16x256xf32>
    %20 = arith.addf %16, %19 : vector<16x256xf32>
    %cst_18 = arith.constant 0.000000e+00 : f32
    %21 = vector.broadcast %cst_18 : f32 to vector<16x256xf32>
    %22 = arith.maximumf %20, %21 : vector<16x256xf32>
    %c0_19 = arith.constant 0 : index
    %c0_20 = arith.constant 0 : index
    %c0_21 = arith.constant 0 : index
    %23 = vector.load %arg8[%c0_19, %c0_20, %c0_21] : memref<1x256x128xf32, #tpu.memory_space<vmem>>, vector<1x256x128xf32>
    %24 = vector.shape_cast %23 : vector<1x256x128xf32> to vector<256x128xf32>
    %cst_22 = arith.constant dense<0.000000e+00> : vector<16x128xf32>
    %25 = tpu.matmul %22, %24, %cst_22 {dimension_numbers = #tpu.dot_dimension_numbers<[1], [0], [0], [1], [0, 0, 1, 1], [], []>} : vector<16x256xf32>, vector<256x128xf32>, vector<16x128xf32> -> vector<16x128xf32>
    %c0_23 = arith.constant 0 : index
    %c0_24 = arith.constant 0 : index
    %c0_25 = arith.constant 0 : index
    %26 = vector.load %arg9[%c0_23, %c0_24, %c0_25] : memref<1x1x128xf32, #tpu.memory_space<vmem>>, vector<1x1x128xf32>
    %27 = vector.shape_cast %26 : vector<1x1x128xf32> to vector<1x128xf32>
    %28 = vector.broadcast %27 : vector<1x128xf32> to vector<16x128xf32>
    %29 = arith.addf %25, %28 : vector<16x128xf32>
    %cst_26 = arith.constant 0.000000e+00 : f32
    %30 = vector.broadcast %cst_26 : f32 to vector<16x128xf32>
    %31 = arith.maximumf %29, %30 : vector<16x128xf32>
    %c0_27 = arith.constant 0 : index
    %c0_28 = arith.constant 0 : index
    %32 = vector.load %arg18[%c0_27, %c0_28] : memref<16x128xf32, #tpu.memory_space<vmem>>, vector<16x128xf32>
    tpu.vector_store %arg18[%c0_27, %c0_28], %31 {strides = array<i32>} : memref<16x128xf32, #tpu.memory_space<vmem>>, vector<16x128xf32>,
    %c1_i32 = arith.constant 1 : i32
    %33 = arith.cmpi eq, %arg0, %c1_i32 : i32
    %34 = arith.extui %33 : i1 to i32
    %c0_i32_29 = arith.constant 0 : i32
    %35 = arith.cmpi ne, %34, %c0_i32_29 : i32
    scf.if %35 {
      %c0_30 = arith.constant 0 : index
      %c0_31 = arith.constant 0 : index
      %36 = vector.load %arg10[%c0_30, %c0_31] : memref<2x16xf32, #tpu.memory_space<vmem>>, vector<2x16xf32>
      %cst_32 = arith.constant dense<0.000000e+00> : vector<2x128xf32>
      %37 = tpu.matmul %36, %31, %cst_32 {dimension_numbers = #tpu.dot_dimension_numbers<[1], [0], [0], [1], [0, 0, 1, 1], [], []>} : vector<2x16xf32>, vector<16x128xf32>, vector<2x128xf32> -> vector<2x128xf32>
      %c0_33 = arith.constant 0 : index
      %c0_34 = arith.constant 0 : index
      %38 = vector.load %arg11[%c0_33, %c0_34] : memref<128x128xf32, #tpu.memory_space<vmem>>, vector<128x128xf32>
      %cst_35 = arith.constant dense<0.000000e+00> : vector<2x128xf32>
      %39 = tpu.matmul %37, %38, %cst_35 {dimension_numbers = #tpu.dot_dimension_numbers<[1], [0], [0], [1], [0, 0, 1, 1], [], []>} : vector<2x128xf32>, vector<128x128xf32>, vector<2x128xf32> -> vector<2x128xf32>
      %c0_36 = arith.constant 0 : index
      %c0_37 = arith.constant 0 : index
      %40 = vector.load %arg12[%c0_36, %c0_37] : memref<1x128xf32, #tpu.memory_space<vmem>>, vector<1x128xf32>
      %41 = vector.broadcast %40 : vector<1x128xf32> to vector<2x128xf32>
      %42 = arith.addf %39, %41 : vector<2x128xf32>
      %cst_38 = arith.constant 0.000000e+00 : f32
      %43 = vector.broadcast %cst_38 : f32 to vector<2x128xf32>
      %44 = arith.maximumf %42, %43 : vector<2x128xf32>
      %c0_39 = arith.constant 0 : index
      %c0_40 = arith.constant 0 : index
      %45 = vector.load %arg13[%c0_39, %c0_40] : memref<128x128xf32, #tpu.memory_space<vmem>>, vector<128x128xf32>
      %cst_41 = arith.constant dense<0.000000e+00> : vector<2x128xf32>
      %46 = tpu.matmul %44, %45, %cst_41 {dimension_numbers = #tpu.dot_dimension_numbers<[1], [0], [0], [1], [0, 0, 1, 1], [], []>} : vector<2x128xf32>, vector<128x128xf32>, vector<2x128xf32> -> vector<2x128xf32>
      %c0_42 = arith.constant 0 : index
      %c0_43 = arith.constant 0 : index
      %47 = vector.load %arg14[%c0_42, %c0_43] : memref<1x128xf32, #tpu.memory_space<vmem>>, vector<1x128xf32>
      %48 = vector.broadcast %47 : vector<1x128xf32> to vector<2x128xf32>
      %49 = arith.addf %46, %48 : vector<2x128xf32>
      %cst_44 = arith.constant 0.000000e+00 : f32
      %50 = vector.broadcast %cst_44 : f32 to vector<2x128xf32>
      %51 = arith.maximumf %49, %50 : vector<2x128xf32>
      %c0_45 = arith.constant 0 : index
      %c0_46 = arith.constant 0 : index
      %52 = vector.load %arg15[%c0_45, %c0_46] : memref<128x8xf32, #tpu.memory_space<vmem>>, vector<128x8xf32>
      %cst_47 = arith.constant dense<0.000000e+00> : vector<2x8xf32>
      %53 = tpu.matmul %51, %52, %cst_47 {dimension_numbers = #tpu.dot_dimension_numbers<[1], [0], [0], [1], [0, 0, 1, 1], [], []>} : vector<2x128xf32>, vector<128x8xf32>, vector<2x8xf32> -> vector<2x8xf32>
      %c0_48 = arith.constant 0 : index
      %c0_49 = arith.constant 0 : index
      %54 = vector.load %arg16[%c0_48, %c0_49] : memref<1x8xf32, #tpu.memory_space<vmem>>, vector<1x8xf32>
      %55 = vector.broadcast %54 : vector<1x8xf32> to vector<2x8xf32>
      %56 = arith.addf %53, %55 : vector<2x8xf32>
      %c0_50 = arith.constant 0 : index
      %c0_51 = arith.constant 0 : index
      %57 = vector.load %arg17[%c0_50, %c0_51] : memref<2x8xf32, #tpu.memory_space<vmem>>, vector<2x8xf32>
      tpu.vector_store %arg17[%c0_50, %c0_51], %56 {strides = array<i32>} : memref<2x8xf32, #tpu.memory_space<vmem>>, vector<2x8xf32>,
    } else {
    }
    return
  }
  func.func @transform_0(%arg0: i32) -> (i32, i32) {
    %c0_i32 = arith.constant 0 : i32
    %c0_i32_0 = arith.constant 0 : i32
    %c0_i32_1 = arith.constant 0 : i32
    return %c0_i32, %c0_i32_0 : i32, i32
  }
  func.func @transform_1(%arg0: i32) -> (i32, i32) {
    %c0_i32 = arith.constant 0 : i32
    %c0_i32_0 = arith.constant 0 : i32
    %c0_i32_1 = arith.constant 0 : i32
    return %c0_i32, %c0_i32_0 : i32, i32
  }
  func.func @transform_2(%arg0: i32) -> (i32, i32) {
    %c0_i32 = arith.constant 0 : i32
    %c0_i32_0 = arith.constant 0 : i32
    %c0_i32_1 = arith.constant 0 : i32
    return %c0_i32, %c0_i32_0 : i32, i32
  }
  func.func @transform_3(%arg0: i32) -> (i32, i32) {
    %c0_i32 = arith.constant 0 : i32
    %c0_i32_0 = arith.constant 0 : i32
    %c0_i32_1 = arith.constant 0 : i32
    return %c0_i32, %c0_i32_0 : i32, i32
  }
  func.func @transform_4(%arg0: i32) -> (i32, i32) {
    %c0_i32 = arith.constant 0 : i32
    %c0_i32_0 = arith.constant 0 : i32
    %c0_i32_1 = arith.constant 0 : i32
    return %c0_i32, %c0_i32_0 : i32, i32
  }
  func.func @transform_5(%arg0: i32) -> (i32, i32, i32) {
    %c0_i32 = arith.constant 0 : i32
    %c0_i32_0 = arith.constant 0 : i32
    %c0_i32_1 = arith.constant 0 : i32
    return %arg0, %c0_i32, %c0_i32_0 : i32, i32, i32
  }
  func.func @transform_6(%arg0: i32) -> (i32, i32, i32) {
    %c0_i32 = arith.constant 0 : i32
    %c0_i32_0 = arith.constant 0 : i32
    %c0_i32_1 = arith.constant 0 : i32
    return %arg0, %c0_i32, %c0_i32_0 : i32, i32, i32
  }
  func.func @transform_7(%arg0: i32) -> (i32, i32, i32) {
    %c0_i32 = arith.constant 0 : i32
    %c0_i32_0 = arith.constant 0 : i32
    %c0_i32_1 = arith.constant 0 : i32
    return %arg0, %c0_i32, %c0_i32_0 : i32, i32, i32
  }
  func.func @transform_8(%arg0: i32) -> (i32, i32, i32) {
    %c0_i32 = arith.constant 0 : i32
    %c0_i32_0 = arith.constant 0 : i32
    %c0_i32_1 = arith.constant 0 : i32
    return %arg0, %c0_i32, %c0_i32_0 : i32, i32, i32
  }
  func.func @transform_9(%arg0: i32) -> (i32, i32) {
    %c0_i32 = arith.constant 0 : i32
    %c0_i32_0 = arith.constant 0 : i32
    %c0_i32_1 = arith.constant 0 : i32
    return %c0_i32, %c0_i32_0 : i32, i32
  }
  func.func @transform_10(%arg0: i32) -> (i32, i32) {
    %c0_i32 = arith.constant 0 : i32
    %c0_i32_0 = arith.constant 0 : i32
    %c0_i32_1 = arith.constant 0 : i32
    return %c0_i32, %c0_i32_0 : i32, i32
  }
  func.func @transform_11(%arg0: i32) -> (i32, i32) {
    %c0_i32 = arith.constant 0 : i32
    %c0_i32_0 = arith.constant 0 : i32
    %c0_i32_1 = arith.constant 0 : i32
    return %c0_i32, %c0_i32_0 : i32, i32
  }
  func.func @transform_12(%arg0: i32) -> (i32, i32) {
    %c0_i32 = arith.constant 0 : i32
    %c0_i32_0 = arith.constant 0 : i32
    %c0_i32_1 = arith.constant 0 : i32
    return %c0_i32, %c0_i32_0 : i32, i32
  }
  func.func @transform_13(%arg0: i32) -> (i32, i32) {
    %c0_i32 = arith.constant 0 : i32
    %c0_i32_0 = arith.constant 0 : i32
    %c0_i32_1 = arith.constant 0 : i32
    return %c0_i32, %c0_i32_0 : i32, i32
  }
  func.func @transform_14(%arg0: i32) -> (i32, i32) {
    %c0_i32 = arith.constant 0 : i32
    %c0_i32_0 = arith.constant 0 : i32
    %c0_i32_1 = arith.constant 0 : i32
    return %c0_i32, %c0_i32_0 : i32, i32
  }
  func.func @transform_15(%arg0: i32) -> (i32, i32) {
    %c0_i32 = arith.constant 0 : i32
    %c0_i32_0 = arith.constant 0 : i32
    %c0_i32_1 = arith.constant 0 : i32
    return %c0_i32, %c0_i32_0 : i32, i32
  }
  func.func @transform_16(%arg0: i32) -> (i32, i32) {
    %c0_i32 = arith.constant 0 : i32
    %c0_i32_0 = arith.constant 0 : i32
    %c0_i32_1 = arith.constant 0 : i32
    return %c0_i32, %c0_i32_0 : i32, i32
  }
}

</mosaic_0001>

<llo_original>
// kernel: tpu_custom_call.1
$region0: #{tpu_custom_call.1}
  #allocation0 [shape = 'u32[]', space=smem, size = 0x4, offset = 0x4, fixed_abs, tag = 'smem constant byte address 0x4 - core index']
  #allocation1 [shape = 'u32[144,128]{1,0:T(1,128)}', space=vmem, size = 0x12000, scoped, tag = 'internal scratch']
  #allocation2 [shape = 'f32[16,128]{1,0:T(8,128)}', space=vmem, size = 0x2000, scoped, tag = 'scratch operand']
  %s0 = inlined_call_operand.vmem [shape: f32[24,16], index: 0, kind: input, shape index: {}]
  %s1 = inlined_call_operand.vmem [shape: f32[16,24], index: 1, kind: input, shape index: {}]
  %s2 = inlined_call_operand.vmem [shape: f32[16,128], index: 2, kind: input, shape index: {}]
  %s3 = inlined_call_operand.vmem [shape: f32[24,128], index: 3, kind: input, shape index: {}]
  %s4 = inlined_call_operand.vmem [shape: f32[16,1], index: 4, kind: input, shape index: {}]
  %s5 = inlined_call_operand.hbm [shape: f32[2,128,256], index: 5, kind: input, shape index: {}]
  %s6 = inlined_call_operand.vmem [shape: f32[2,1,256], index: 6, kind: input, shape index: {}]
  %s7 = inlined_call_operand.hbm [shape: f32[2,256,128], index: 7, kind: input, shape index: {}]
  %s8 = inlined_call_operand.vmem [shape: f32[2,1,128], index: 8, kind: input, shape index: {}]
  %s9 = inlined_call_operand.vmem [shape: f32[2,16], index: 9, kind: input, shape index: {}]
  %s10 = inlined_call_operand.vmem [shape: f32[128,128], index: 10, kind: input, shape index: {}]
  %s11 = inlined_call_operand.vmem [shape: f32[1,128], index: 11, kind: input, shape index: {}]
  %s12 = inlined_call_operand.hbm [shape: f32[128,128], index: 12, kind: input, shape index: {}]
  %s13 = inlined_call_operand.vmem [shape: f32[1,128], index: 13, kind: input, shape index: {}]
  %s14 = inlined_call_operand.vmem [shape: f32[128,8], index: 14, kind: input, shape index: {}]
  %s15 = inlined_call_operand.vmem [shape: f32[1,8], index: 15, kind: input, shape index: {}]
  %s16 = inlined_call_operand.hbm [shape: f32[2,8], index: 16, kind: output, shape index: {}]
  %s17 = sld [smem:[#allocation0]]
  $region117: #{tpu_custom_call.1} parent=0
    _
  %s19 = ssub.s32 1, %s17
  %s20 = scalar_select 0, %s19, %s17
  $region1: #{tpu_custom_call.1} parent=0
    #allocation3 [shape = 'u8[262144]{0}', space=vmem, size = 0x40000, scoped, tag = 'input window, operand 5']
    #allocation4 [shape = 's32[2]{0}', space=sflag, size = 0x8, scoped, tag = 'scoped memory for tpu_custom_call.1']
    #allocation5 [shape = 's32[2]{0}', space=sflag, size = 0x8, scoped, tag = 'scoped memory for tpu_custom_call.1']
    #allocation6 [shape = 'u8[262144]{0}', space=vmem, size = 0x40000, scoped, tag = 'input window, operand 7']
    #allocation7 [shape = 's32[2]{0}', space=sflag, size = 0x8, scoped, tag = 'scoped memory for tpu_custom_call.1']
    #allocation8 [shape = 'u8[65536]{0}', space=vmem, size = 0x10000, scoped, tag = 'input window, operand 12, single buffered']
    #allocation9 [shape = 'u8[1024]{0}', space=vmem, size = 0x400, scoped, tag = 'output window, operand 0, single buffered']
    %21 = vsyncpa [#allocation4], 0
    %s22 = scalar_lea.sflag [#allocation4], 1
    %23 = vsyncpa %s22, 0
    %24 = vsyncpa [#allocation7], 0
    %s25 = scalar_lea.sflag [#allocation7], 1
    %26 = vsyncpa %s25, 0
    %27 = vsyncpa [#allocation5], 0
    loop: start=0, step=1, limit=4
    $region2: #{tpu_custom_call.1} parent=1 // loop_pre_header
      _
    $region3: #{tpu_custom_call.1} parent=1 // loop_header
      %s29 = sphi 0, %s33
      %p30 = scmp.ge.s32.totalorder %s29, 4
      %s37 = sphi 0, %s37
      %s39 = sphi 0, %s37
      %s40 = sphi 0, %s39
      %s54 = sphi 0, %s40
      %s58 = sphi 0, %s58
      %s60 = sphi 0, %s58
      %s61 = sphi 0, %s60
      %s75 = sphi 0, %s61
      %s79 = sphi 0, %s79
      %s81 = sphi 0, %s79
      %s82 = sphi 0, %s81
      %s96 = sphi 0, %s82
      %s100 = sphi 0, %s100
      %s102 = sphi 0, %s100
      %s103 = sphi 0, %s102
      %s117 = sphi 0, %s103
      %s121 = sphi 0, %s121
      %s123 = sphi 0, %s121
      %s124 = sphi 0, %s123
      %s138 = sphi 0, %s124
      %s144 = sphi 0, %s146
      %s147 = sphi 0, %s144
      %s148 = sphi 0, %s147
      %s164 = sphi 0, %s148
      %s170 = sphi 0, %s172
      %s173 = sphi 0, %s170
      %s174 = sphi 0, %s173
      %s190 = sphi 0, %s174
      %s196 = sphi 0, %s198
      %s199 = sphi 0, %s196
      %s200 = sphi 0, %s199
      %s216 = sphi 0, %s200
      %s222 = sphi 0, %s224
      %s225 = sphi 0, %s222
      %s226 = sphi 0, %s225
      %s242 = sphi 0, %s226
      %s246 = sphi 0, %s246
      %s248 = sphi 0, %s246
      %s249 = sphi 0, %s248
      %s263 = sphi 0, %s249
      %s267 = sphi 0, %s267
      %s269 = sphi 0, %s267
      %s270 = sphi 0, %s269
      %s284 = sphi 0, %s270
      %s288 = sphi 0, %s288
      %s290 = sphi 0, %s288
      %s291 = sphi 0, %s290
      %s305 = sphi 0, %s291
      %s309 = sphi 0, %s309
      %s311 = sphi 0, %s309
      %s312 = sphi 0, %s311
      %s326 = sphi 0, %s312
      %s330 = sphi 0, %s330
      %s332 = sphi 0, %s330
      %s333 = sphi 0, %s332
      %s347 = sphi 0, %s333
      %s351 = sphi 0, %s351
      %s353 = sphi 0, %s351
      %s354 = sphi 0, %s353
      %s368 = sphi 0, %s354
      %s372 = sphi 0, %s372
      %s374 = sphi 0, %s372
      %s375 = sphi 0, %s374
      %s389 = sphi 0, %s375
      %s393 = sphi 0, %s393
      %s395 = sphi 0, %s393
      %s396 = sphi 0, %s395
      %s410 = sphi 0, %s396
    $region4: #{tpu_custom_call.1} parent=1 // loop_header_branch
      %32 = sbr.rel (%p30) target = $region8
    $region5: #{tpu_custom_call.1} parent=1 // loop_body
      %s34 = ssub.s32 %s29, 1
      %s35 = ssub.s32 %s29, 2
      %s36 = sadd.s32 %s29, 1
      %s38 = sadd.s32 %s37, 1
      %p41 = scmp.eq.s32.totalorder %s29, 1
      %p42 = scmp.ne.s32.totalorder %s37, %s39
      %p43 = scmp.eq.s32.totalorder %s29, 0
      %p44 = por %p42, %p43
      %p45 = scmp.ne.s32.totalorder %s37, %s39
      %p46 = scmp.eq.s32.totalorder %s34, 1
      %p47 = por %p45, %p46
      %p48 = scmp.ne.s32.totalorder %s39, %s40
      %p49 = scmp.eq.s32.totalorder %s34, 0
      %p50 = por %p48, %p49
      %p51 = scmp.ne.s32.totalorder %s39, %s40
      %p52 = scmp.eq.s32.totalorder %s35, 1
      %p53 = por %p51, %p52
      %p55 = scmp.ne.s32.totalorder %s40, %s54
      %p56 = scmp.eq.s32.totalorder %s35, 0
      %p57 = por %p55, %p56
      %s59 = sadd.s32 %s58, 1
      %p62 = scmp.eq.s32.totalorder %s29, 1
      %p63 = scmp.ne.s32.totalorder %s58, %s60
      %p64 = scmp.eq.s32.totalorder %s29, 0
      %p65 = por %p63, %p64
      %p66 = scmp.ne.s32.totalorder %s58, %s60
      %p67 = scmp.eq.s32.totalorder %s34, 1
      %p68 = por %p66, %p67
      %p69 = scmp.ne.s32.totalorder %s60, %s61
      %p70 = scmp.eq.s32.totalorder %s34, 0
      %p71 = por %p69, %p70
      %p72 = scmp.ne.s32.totalorder %s60, %s61
      %p73 = scmp.eq.s32.totalorder %s35, 1
      %p74 = por %p72, %p73
      %p76 = scmp.ne.s32.totalorder %s61, %s75
      %p77 = scmp.eq.s32.totalorder %s35, 0
      %p78 = por %p76, %p77
      %s80 = sadd.s32 %s79, 1
      %p83 = scmp.eq.s32.totalorder %s29, 1
      %p84 = scmp.ne.s32.totalorder %s79, %s81
      %p85 = scmp.eq.s32.totalorder %s29, 0
      %p86 = por %p84, %p85
      %p87 = scmp.ne.s32.totalorder %s79, %s81
      %p88 = scmp.eq.s32.totalorder %s34, 1
      %p89 = por %p87, %p88
      %p90 = scmp.ne.s32.totalorder %s81, %s82
      %p91 = scmp.eq.s32.totalorder %s34, 0
      %p92 = por %p90, %p91
      %p93 = scmp.ne.s32.totalorder %s81, %s82
      %p94 = scmp.eq.s32.totalorder %s35, 1
      %p95 = por %p93, %p94
      %p97 = scmp.ne.s32.totalorder %s82, %s96
      %p98 = scmp.eq.s32.totalorder %s35, 0
      %p99 = por %p97, %p98
      %s101 = sadd.s32 %s100, 1
      %p104 = scmp.eq.s32.totalorder %s29, 1
      %p105 = scmp.ne.s32.totalorder %s100, %s102
      %p106 = scmp.eq.s32.totalorder %s29, 0
      %p107 = por %p105, %p106
      %p108 = scmp.ne.s32.totalorder %s100, %s102
      %p109 = scmp.eq.s32.totalorder %s34, 1
      %p110 = por %p108, %p109
      %p111 = scmp.ne.s32.totalorder %s102, %s103
      %p112 = scmp.eq.s32.totalorder %s34, 0
      %p113 = por %p111, %p112
      %p114 = scmp.ne.s32.totalorder %s102, %s103
      %p115 = scmp.eq.s32.totalorder %s35, 1
      %p116 = por %p114, %p115
      %p118 = scmp.ne.s32.totalorder %s103, %s117
      %p119 = scmp.eq.s32.totalorder %s35, 0
      %p120 = por %p118, %p119
      %s122 = sadd.s32 %s121, 1
      %p125 = scmp.eq.s32.totalorder %s29, 1
      %p126 = scmp.ne.s32.totalorder %s121, %s123
      %p127 = scmp.eq.s32.totalorder %s29, 0
      %p128 = por %p126, %p127
      %p129 = scmp.ne.s32.totalorder %s121, %s123
      %p130 = scmp.eq.s32.totalorder %s34, 1
      %p131 = por %p129, %p130
      %p132 = scmp.ne.s32.totalorder %s123, %s124
      %p133 = scmp.eq.s32.totalorder %s34, 0
      %p134 = por %p132, %p133
      %p135 = scmp.ne.s32.totalorder %s123, %s124
      %p136 = scmp.eq.s32.totalorder %s35, 1
      %p137 = por %p135, %p136
      %p139 = scmp.ne.s32.totalorder %s124, %s138
      %p140 = scmp.eq.s32.totalorder %s35, 0
      %p141 = por %p139, %p140
      %s142 = ssub.s32 %s29, %s36
      %p143 = scmp.eq.s32.totalorder %s142, 0
      %s145 = sadd.s32 %s144, 1
      %s146 = scalar_select %p143, %s144, %s145
      %p149 = pneg %p143
      %p150 = scmp.eq.s32.totalorder %s29, 1
      %p151 = por %p149, %p150
      %p152 = scmp.ne.s32.totalorder %s144, %s147
      %p153 = scmp.eq.s32.totalorder %s29, 0
      %p154 = por %p152, %p153
      %p155 = scmp.ne.s32.totalorder %s144, %s147
      %p156 = scmp.eq.s32.totalorder %s34, 1
      %p157 = por %p155, %p156
      %p158 = scmp.ne.s32.totalorder %s147, %s148
      %p159 = scmp.eq.s32.totalorder %s34, 0
      %p160 = por %p158, %p159
      %p161 = scmp.ne.s32.totalorder %s147, %s148
      %p162 = scmp.eq.s32.totalorder %s35, 1
      %p163 = por %p161, %p162
      %p165 = scmp.ne.s32.totalorder %s148, %s164
      %p166 = scmp.eq.s32.totalorder %s35, 0
      %p167 = por %p165, %p166
      %s168 = ssub.s32 %s29, %s36
      %p169 = scmp.eq.s32.totalorder %s168, 0
      %s171 = sadd.s32 %s170, 1
      %s172 = scalar_select %p169, %s170, %s171
      %p175 = pneg %p169
      %p176 = scmp.eq.s32.totalorder %s29, 1
      %p177 = por %p175, %p176
      %p178 = scmp.ne.s32.totalorder %s170, %s173
      %p179 = scmp.eq.s32.totalorder %s29, 0
      %p180 = por %p178, %p179
      %p181 = scmp.ne.s32.totalorder %s170, %s173
      %p182 = scmp.eq.s32.totalorder %s34, 1
      %p183 = por %p181, %p182
      %p184 = scmp.ne.s32.totalorder %s173, %s174
      %p185 = scmp.eq.s32.totalorder %s34, 0
      %p186 = por %p184, %p185
      %p187 = scmp.ne.s32.totalorder %s173, %s174
      %p188 = scmp.eq.s32.totalorder %s35, 1
      %p189 = por %p187, %p188
      %p191 = scmp.ne.s32.totalorder %s174, %s190
      %p192 = scmp.eq.s32.totalorder %s35, 0
      %p193 = por %p191, %p192
      %s194 = ssub.s32 %s29, %s36
      %p195 = scmp.eq.s32.totalorder %s194, 0
      %s197 = sadd.s32 %s196, 1
      %s198 = scalar_select %p195, %s196, %s197
      %p201 = pneg %p195
      %p202 = scmp.eq.s32.totalorder %s29, 1
      %p203 = por %p201, %p202
      %p204 = scmp.ne.s32.totalorder %s196, %s199
      %p205 = scmp.eq.s32.totalorder %s29, 0
      %p206 = por %p204, %p205
      %p207 = scmp.ne.s32.totalorder %s196, %s199
      %p208 = scmp.eq.s32.totalorder %s34, 1
      %p209 = por %p207, %p208
      %p210 = scmp.ne.s32.totalorder %s199, %s200
      %p211 = scmp.eq.s32.totalorder %s34, 0
      %p212 = por %p210, %p211
      %p213 = scmp.ne.s32.totalorder %s199, %s200
      %p214 = scmp.eq.s32.totalorder %s35, 1
      %p215 = por %p213, %p214
      %p217 = scmp.ne.s32.totalorder %s200, %s216
      %p218 = scmp.eq.s32.totalorder %s35, 0
      %p219 = por %p217, %p218
      %s220 = ssub.s32 %s29, %s36
      %p221 = scmp.eq.s32.totalorder %s220, 0
      %s223 = sadd.s32 %s222, 1
      %s224 = scalar_select %p221, %s222, %s223
      %p227 = pneg %p221
      %p228 = scmp.eq.s32.totalorder %s29, 1
      %p229 = por %p227, %p228
      %p230 = scmp.ne.s32.totalorder %s222, %s225
      %p231 = scmp.eq.s32.totalorder %s29, 0
      %p232 = por %p230, %p231
      %p233 = scmp.ne.s32.totalorder %s222, %s225
      %p234 = scmp.eq.s32.totalorder %s34, 1
      %p235 = por %p233, %p234
      %p236 = scmp.ne.s32.totalorder %s225, %s226
      %p237 = scmp.eq.s32.totalorder %s34, 0
      %p238 = por %p236, %p237
      %p239 = scmp.ne.s32.totalorder %s225, %s226
      %p240 = scmp.eq.s32.totalorder %s35, 1
      %p241 = por %p239, %p240
      %p243 = scmp.ne.s32.totalorder %s226, %s242
      %p244 = scmp.eq.s32.totalorder %s35, 0
      %p245 = por %p243, %p244
      %s247 = sadd.s32 %s246, 1
      %p250 = scmp.eq.s32.totalorder %s29, 1
      %p251 = scmp.ne.s32.totalorder %s246, %s248
      %p252 = scmp.eq.s32.totalorder %s29, 0
      %p253 = por %p251, %p252
      %p254 = scmp.ne.s32.totalorder %s246, %s248
      %p255 = scmp.eq.s32.totalorder %s34, 1
      %p256 = por %p254, %p255
      %p257 = scmp.ne.s32.totalorder %s248, %s249
      %p258 = scmp.eq.s32.totalorder %s34, 0
      %p259 = por %p257, %p258
      %p260 = scmp.ne.s32.totalorder %s248, %s249
      %p261 = scmp.eq.s32.totalorder %s35, 1
      %p262 = por %p260, %p261
      %p264 = scmp.ne.s32.totalorder %s249, %s263
      %p265 = scmp.eq.s32.totalorder %s35, 0
      %p266 = por %p264, %p265
      %s268 = sadd.s32 %s267, 1
      %p271 = scmp.eq.s32.totalorder %s29, 1
      %p272 = scmp.ne.s32.totalorder %s267, %s269
      %p273 = scmp.eq.s32.totalorder %s29, 0
      %p274 = por %p272, %p273
      %p275 = scmp.ne.s32.totalorder %s267, %s269
      %p276 = scmp.eq.s32.totalorder %s34, 1
      %p277 = por %p275, %p276
      %p278 = scmp.ne.s32.totalorder %s269, %s270
      %p279 = scmp.eq.s32.totalorder %s34, 0
      %p280 = por %p278, %p279
      %p281 = scmp.ne.s32.totalorder %s269, %s270
      %p282 = scmp.eq.s32.totalorder %s35, 1
      %p283 = por %p281, %p282
      %p285 = scmp.ne.s32.totalorder %s270, %s284
      %p286 = scmp.eq.s32.totalorder %s35, 0
      %p287 = por %p285, %p286
      %s289 = sadd.s32 %s288, 1
      %p292 = scmp.eq.s32.totalorder %s29, 1
      %p293 = scmp.ne.s32.totalorder %s288, %s290
      %p294 = scmp.eq.s32.totalorder %s29, 0
      %p295 = por %p293, %p294
      %p296 = scmp.ne.s32.totalorder %s288, %s290
      %p297 = scmp.eq.s32.totalorder %s34, 1
      %p298 = por %p296, %p297
      %p299 = scmp.ne.s32.totalorder %s290, %s291
      %p300 = scmp.eq.s32.totalorder %s34, 0
      %p301 = por %p299, %p300
      %p302 = scmp.ne.s32.totalorder %s290, %s291
      %p303 = scmp.eq.s32.totalorder %s35, 1
      %p304 = por %p302, %p303
      %p306 = scmp.ne.s32.totalorder %s291, %s305
      %p307 = scmp.eq.s32.totalorder %s35, 0
      %p308 = por %p306, %p307
      %s310 = sadd.s32 %s309, 1
      %p313 = scmp.eq.s32.totalorder %s29, 1
      %p314 = scmp.ne.s32.totalorder %s309, %s311
      %p315 = scmp.eq.s32.totalorder %s29, 0
      %p316 = por %p314, %p315
      %p317 = scmp.ne.s32.totalorder %s309, %s311
      %p318 = scmp.eq.s32.totalorder %s34, 1
      %p319 = por %p317, %p318
      %p320 = scmp.ne.s32.totalorder %s311, %s312
      %p321 = scmp.eq.s32.totalorder %s34, 0
      %p322 = por %p320, %p321
      %p323 = scmp.ne.s32.totalorder %s311, %s312
      %p324 = scmp.eq.s32.totalorder %s35, 1
      %p325 = por %p323, %p324
      %p327 = scmp.ne.s32.totalorder %s312, %s326
      %p328 = scmp.eq.s32.totalorder %s35, 0
      %p329 = por %p327, %p328
      %s331 = sadd.s32 %s330, 1
      %p334 = scmp.eq.s32.totalorder %s29, 1
      %p335 = scmp.ne.s32.totalorder %s330, %s332
      %p336 = scmp.eq.s32.totalorder %s29, 0
      %p337 = por %p335, %p336
      %p338 = scmp.ne.s32.totalorder %s330, %s332
      %p339 = scmp.eq.s32.totalorder %s34, 1
      %p340 = por %p338, %p339
      %p341 = scmp.ne.s32.totalorder %s332, %s333
      %p342 = scmp.eq.s32.totalorder %s34, 0
      %p343 = por %p341, %p342
      %p344 = scmp.ne.s32.totalorder %s332, %s333
      %p345 = scmp.eq.s32.totalorder %s35, 1
      %p346 = por %p344, %p345
      %p348 = scmp.ne.s32.totalorder %s333, %s347
      %p349 = scmp.eq.s32.totalorder %s35, 0
      %p350 = por %p348, %p349
      %s352 = sadd.s32 %s351, 1
      %p355 = scmp.eq.s32.totalorder %s29, 1
      %p356 = scmp.ne.s32.totalorder %s351, %s353
      %p357 = scmp.eq.s32.totalorder %s29, 0
      %p358 = por %p356, %p357
      %p359 = scmp.ne.s32.totalorder %s351, %s353
      %p360 = scmp.eq.s32.totalorder %s34, 1
      %p361 = por %p359, %p360
      %p362 = scmp.ne.s32.totalorder %s353, %s354
      %p363 = scmp.eq.s32.totalorder %s34, 0
      %p364 = por %p362, %p363
      %p365 = scmp.ne.s32.totalorder %s353, %s354
      %p366 = scmp.eq.s32.totalorder %s35, 1
      %p367 = por %p365, %p366
      %p369 = scmp.ne.s32.totalorder %s354, %s368
      %p370 = scmp.eq.s32.totalorder %s35, 0
      %p371 = por %p369, %p370
      %s373 = sadd.s32 %s372, 1
      %p376 = scmp.eq.s32.totalorder %s29, 1
      %p377 = scmp.ne.s32.totalorder %s372, %s374
      %p378 = scmp.eq.s32.totalorder %s29, 0
      %p379 = por %p377, %p378
      %p380 = scmp.ne.s32.totalorder %s372, %s374
      %p381 = scmp.eq.s32.totalorder %s34, 1
      %p382 = por %p380, %p381
      %p383 = scmp.ne.s32.totalorder %s374, %s375
      %p384 = scmp.eq.s32.totalorder %s34, 0
      %p385 = por %p383, %p384
      %p386 = scmp.ne.s32.totalorder %s374, %s375
      %p387 = scmp.eq.s32.totalorder %s35, 1
      %p388 = por %p386, %p387
      %p390 = scmp.ne.s32.totalorder %s375, %s389
      %p391 = scmp.eq.s32.totalorder %s35, 0
      %p392 = por %p390, %p391
      %s394 = sadd.s32 %s393, 1
      %p397 = scmp.eq.s32.totalorder %s29, 1
      %p398 = scmp.ne.s32.totalorder %s393, %s395
      %p399 = scmp.eq.s32.totalorder %s29, 0
      %p400 = por %p398, %p399
      %p401 = scmp.ne.s32.totalorder %s393, %s395
      %p402 = scmp.eq.s32.totalorder %s34, 1
      %p403 = por %p401, %p402
      %p404 = scmp.ne.s32.totalorder %s395, %s396
      %p405 = scmp.eq.s32.totalorder %s34, 0
      %p406 = por %p404, %p405
      %p407 = scmp.ne.s32.totalorder %s395, %s396
      %p408 = scmp.eq.s32.totalorder %s35, 1
      %p409 = por %p407, %p408
      %p411 = scmp.ne.s32.totalorder %s396, %s410
      %p412 = scmp.eq.s32.totalorder %s35, 0
      %p413 = por %p411, %p412
      %p414 = scmp.le.s32.totalorder 1, %s29
      %p415 = scmp.lt.s32.totalorder %s29, 3
      %p416 = pnand %p414, %p415
      %p417 = pneg %p416
      // Predicated region
      $region9: #{tpu_custom_call.1} parent=5 // pred_check
        _
      $region10: #{tpu_custom_call.1} parent=5 // pred_check_branch
        %419 = sbr.rel (%p416) target = $region12
      $region11: #{tpu_custom_call.1} parent=5 // pred_region
        %s420 = ssub.s32 %s29, 1
        // Predicated region
        $region13: #{tpu_custom_call.1} parent=11 // pred_check
          %p421 = pneg %p50
        $region14: #{tpu_custom_call.1} parent=11 // pred_check_branch
          %423 = sbr.rel (%p421) target = $region16
        $region15: #{tpu_custom_call.1} parent=11 // pred_region
          _
        $region16: #{tpu_custom_call.1} parent=11 // pred_fallthru
          _
        // Predicated region
        $region17: #{tpu_custom_call.1} parent=11 // pred_check
          %p424 = pneg %p71
        $region18: #{tpu_custom_call.1} parent=11 // pred_check_branch
          %426 = sbr.rel (%p424) target = $region20
        $region19: #{tpu_custom_call.1} parent=11 // pred_region
          _
        $region20: #{tpu_custom_call.1} parent=11 // pred_fallthru
          _
        // Predicated region
        $region21: #{tpu_custom_call.1} parent=11 // pred_check
          %p427 = pneg %p92
        $region22: #{tpu_custom_call.1} parent=11 // pred_check_branch
          %429 = sbr.rel (%p427) target = $region24
        $region23: #{tpu_custom_call.1} parent=11 // pred_region
          _
        $region24: #{tpu_custom_call.1} parent=11 // pred_fallthru
          _
        // Predicated region
        $region25: #{tpu_custom_call.1} parent=11 // pred_check
          %p430 = pneg %p113
        $region26: #{tpu_custom_call.1} parent=11 // pred_check_branch
          %432 = sbr.rel (%p430) target = $region28
        $region27: #{tpu_custom_call.1} parent=11 // pred_region
          _
        $region28: #{tpu_custom_call.1} parent=11 // pred_fallthru
          _
        // Predicated region
        $region29: #{tpu_custom_call.1} parent=11 // pred_check
          %p433 = pneg %p134
        $region30: #{tpu_custom_call.1} parent=11 // pred_check_branch
          %435 = sbr.rel (%p433) target = $region32
        $region31: #{tpu_custom_call.1} parent=11 // pred_region
          _
        $region32: #{tpu_custom_call.1} parent=11 // pred_fallthru
          _
        // Predicated region
        $region33: #{tpu_custom_call.1} parent=11 // pred_check
          %p436 = pneg %p259
        $region34: #{tpu_custom_call.1} parent=11 // pred_check_branch
          %438 = sbr.rel (%p436) target = $region36
        $region35: #{tpu_custom_call.1} parent=11 // pred_region
          _
        $region36: #{tpu_custom_call.1} parent=11 // pred_fallthru
          _
        // Predicated region
        $region37: #{tpu_custom_call.1} parent=11 // pred_check
          %p439 = pneg %p280
        $region38: #{tpu_custom_call.1} parent=11 // pred_check_branch
          %441 = sbr.rel (%p439) target = $region40
        $region39: #{tpu_custom_call.1} parent=11 // pred_region
          _
        $region40: #{tpu_custom_call.1} parent=11 // pred_fallthru
          _
        // Predicated region
        $region41: #{tpu_custom_call.1} parent=11 // pred_check
          %p442 = pneg %p301
        $region42: #{tpu_custom_call.1} parent=11 // pred_check_branch
          %444 = sbr.rel (%p442) target = $region44
        $region43: #{tpu_custom_call.1} parent=11 // pred_region
          _
        $region44: #{tpu_custom_call.1} parent=11 // pred_fallthru
          _
        // Predicated region
        $region45: #{tpu_custom_call.1} parent=11 // pred_check
          %p445 = pneg %p322
        $region46: #{tpu_custom_call.1} parent=11 // pred_check_branch
          %447 = sbr.rel (%p445) target = $region48
        $region47: #{tpu_custom_call.1} parent=11 // pred_region
          %s449 = ssub.s32 2048, 2048
          %450 = vsyncadd [#allocation7], %s449
          %s451 = sshll.u32 [#allocation8], 4
          %s452 = int_to_ptr.vmem [resolvable:$true] %s451
          %457 = dma.hbm_to_vmem [thread:$0]  %s12, 2048, %s452, [#allocation7], 128, 128, 8
        $region48: #{tpu_custom_call.1} parent=11 // pred_fallthru
          _
        // Predicated region
        $region49: #{tpu_custom_call.1} parent=11 // pred_check
          %p458 = pneg %p343
        $region50: #{tpu_custom_call.1} parent=11 // pred_check_branch
          %460 = sbr.rel (%p458) target = $region52
        $region51: #{tpu_custom_call.1} parent=11 // pred_region
          _
        $region52: #{tpu_custom_call.1} parent=11 // pred_fallthru
          _
        // Predicated region
        $region53: #{tpu_custom_call.1} parent=11 // pred_check
          %p461 = pneg %p364
        $region54: #{tpu_custom_call.1} parent=11 // pred_check_branch
          %463 = sbr.rel (%p461) target = $region56
        $region55: #{tpu_custom_call.1} parent=11 // pred_region
          _
        $region56: #{tpu_custom_call.1} parent=11 // pred_fallthru
          _
        // Predicated region
        $region57: #{tpu_custom_call.1} parent=11 // pred_check
          %p464 = pneg %p385
        $region58: #{tpu_custom_call.1} parent=11 // pred_check_branch
          %466 = sbr.rel (%p464) target = $region60
        $region59: #{tpu_custom_call.1} parent=11 // pred_region
          _
        $region60: #{tpu_custom_call.1} parent=11 // pred_fallthru
          _
      $region12: #{tpu_custom_call.1} parent=5 // pred_fallthru
        _
      %p467 = scmp.lt.s32.totalorder %s29, 2
      // Predicated region
      $region61: #{tpu_custom_call.1} parent=5 // pred_check
        %p468 = pneg %p467
      $region62: #{tpu_custom_call.1} parent=5 // pred_check_branch
        %470 = sbr.rel (%p468) target = $region64
      $region63: #{tpu_custom_call.1} parent=5 // pred_region
        // Predicated region
        $region65: #{tpu_custom_call.1} parent=63 // pred_check
          %p471 = pneg %p154
        $region66: #{tpu_custom_call.1} parent=63 // pred_check_branch
          %473 = sbr.rel (%p471) target = $region68
        $region67: #{tpu_custom_call.1} parent=63 // pred_region
          %s474 = sand.u32 %s144, 1
          %s475 = scalar_lea.sflag [#allocation4], %s474
          %s476 = sand.u32 %s144, 1
          %s477 = smul.addr %s476, 256
          %s478 = scalar_lea.vmem [#allocation3], %s477
          %s480 = ssub.s32 4096, 4096
          %481 = vsyncadd %s475, %s480
          %s482 = smul.addr %s29, 32
          %s483 = smul.addr %s482, 128
          %s484 = scalar_lea.hbm %s5, %s483
          %s485 = sshll.u32 %s478, 4
          %s486 = int_to_ptr.vmem [resolvable:$true] %s485
          %491 = dma.hbm_to_vmem [thread:$0]  %s484, 4096, %s486, %s475, 256, 256, 16
        $region68: #{tpu_custom_call.1} parent=63 // pred_fallthru
          _
        // Predicated region
        $region69: #{tpu_custom_call.1} parent=63 // pred_check
          %p492 = pneg %p180
        $region70: #{tpu_custom_call.1} parent=63 // pred_check_branch
          %494 = sbr.rel (%p492) target = $region72
        $region71: #{tpu_custom_call.1} parent=63 // pred_region
          %p495 = scmp.lt.s32.totalorder %s29, 1
          %s496 = scalar_select %p495, %s29, 1
          %s497 = smul.addr %s496, 2
          %s498 = scalar_lea.vmem %s6, %s497
        $region72: #{tpu_custom_call.1} parent=63 // pred_fallthru
          _
        // Predicated region
        $region73: #{tpu_custom_call.1} parent=63 // pred_check
          %p499 = pneg %p206
        $region74: #{tpu_custom_call.1} parent=63 // pred_check_branch
          %501 = sbr.rel (%p499) target = $region76
        $region75: #{tpu_custom_call.1} parent=63 // pred_region
          %s502 = sand.u32 %s29, 1
          %s503 = scalar_lea.sflag [#allocation7], %s502
          %s504 = sand.u32 %s196, 1
          %s505 = smul.addr %s504, 256
          %s506 = scalar_lea.vmem [#allocation6], %s505
          %s508 = ssub.s32 4096, 4096
          %509 = vsyncadd %s503, %s508
          %s510 = smul.addr %s29, 32
          %s511 = smul.addr %s510, 128
          %s512 = scalar_lea.hbm %s7, %s511
          %s513 = sshll.u32 %s506, 4
          %s514 = int_to_ptr.vmem [resolvable:$true] %s513
          %519 = dma.hbm_to_vmem [thread:$0]  %s512, 4096, %s514, %s503, 128, 128, 8
        $region76: #{tpu_custom_call.1} parent=63 // pred_fallthru
          _
        // Predicated region
        $region77: #{tpu_custom_call.1} parent=63 // pred_check
          %p520 = pneg %p232
        $region78: #{tpu_custom_call.1} parent=63 // pred_check_branch
          %522 = sbr.rel (%p520) target = $region80
        $region79: #{tpu_custom_call.1} parent=63 // pred_region
          %p523 = scmp.lt.s32.totalorder %s29, 1
          %s524 = scalar_select %p523, %s29, 1
          %s525 = scalar_lea.vmem %s8, %s524
        $region80: #{tpu_custom_call.1} parent=63 // pred_fallthru
          _
      $region64: #{tpu_custom_call.1} parent=5 // pred_fallthru
        _
      %p526 = scmp.le.s32.totalorder 1, %s29
      %p527 = scmp.lt.s32.totalorder %s29, 3
      %p528 = pnand %p526, %p527
      %p529 = pneg %p528
      // Predicated region
      $region81: #{tpu_custom_call.1} parent=5 // pred_check
        _
      $region82: #{tpu_custom_call.1} parent=5 // pred_check_branch
        %531 = sbr.rel (%p528) target = $region84
      $region83: #{tpu_custom_call.1} parent=5 // pred_region
        %s532 = ssub.s32 %s29, 1
        %s533 = sand.u32 %s147, 1
        %s534 = scalar_lea.sflag [#allocation4], %s533
        %s535 = sand.u32 %s147, 1
        %s536 = smul.addr %s535, 256
        %s537 = scalar_lea.vmem [#allocation3], %s536
        // Predicated region
        $region85: #{tpu_custom_call.1} parent=83 // pred_check
          %p538 = pneg %p160
        $region86: #{tpu_custom_call.1} parent=83 // pred_check_branch
          %540 = sbr.rel (%p538) target = $region88
        $region87: #{tpu_custom_call.1} parent=83 // pred_region
          %541 = dma.done %s534, 4096
        $region88: #{tpu_custom_call.1} parent=83 // pred_fallthru
          _
        %s542 = sand.u32 %s34, 1
        %s543 = scalar_lea.sflag [#allocation7], %s542
        %s544 = sand.u32 %s199, 1
        %s545 = smul.addr %s544, 256
        %s546 = scalar_lea.vmem [#allocation6], %s545
        // Predicated region
        $region89: #{tpu_custom_call.1} parent=83 // pred_check
          %p547 = pneg %p212
        $region90: #{tpu_custom_call.1} parent=83 // pred_check_branch
          %549 = sbr.rel (%p547) target = $region92
        $region91: #{tpu_custom_call.1} parent=83 // pred_region
          %550 = dma.done %s543, 4096
        $region92: #{tpu_custom_call.1} parent=83 // pred_fallthru
          _
        // Predicated region
        $region93: #{tpu_custom_call.1} parent=83 // pred_check
          %p551 = pneg %p322
        $region94: #{tpu_custom_call.1} parent=83 // pred_check_branch
          %553 = sbr.rel (%p551) target = $region96
        $region95: #{tpu_custom_call.1} parent=83 // pred_region
          %554 = dma.done [#allocation7], 2048
        $region96: #{tpu_custom_call.1} parent=83 // pred_fallthru
          _
        %p555 = pneg %p50
        %p556 = pneg %p47
        %p557 = pneg %p71
        %p558 = pneg %p68
        %p559 = pneg %p92
        %p560 = pneg %p89
        %p561 = pneg %p113
        %p562 = pneg %p110
        %p563 = pneg %p134
        %p564 = pneg %p131
        %s565 = sand.u32 %s147, 1
        %s566 = scalar_lea.sflag [#allocation4], %s565
        %s567 = sand.u32 %s147, 1
        %s568 = smul.addr %s567, 256
        %s569 = scalar_lea.vmem [#allocation3], %s568
        %p570 = pneg %p160
        %p571 = pneg %p157
        %p572 = scmp.lt.s32.totalorder %s34, 1
        %s573 = scalar_select %p572, %s34, 1
        %s574 = smul.addr %s573, 2
        %s575 = scalar_lea.vmem %s6, %s574
        %p576 = pneg %p186
        %p577 = pneg %p183
        %s578 = sand.u32 %s34, 1
        %s579 = scalar_lea.sflag [#allocation7], %s578
        %s580 = sand.u32 %s199, 1
        %s581 = smul.addr %s580, 256
        %s582 = scalar_lea.vmem [#allocation6], %s581
        %p583 = pneg %p212
        %p584 = pneg %p209
        %p585 = scmp.lt.s32.totalorder %s34, 1
        %s586 = scalar_select %p585, %s34, 1
        %s587 = scalar_lea.vmem %s8, %s586
        %p588 = pneg %p238
        %p589 = pneg %p235
        %p590 = pneg %p259
        %p591 = pneg %p256
        %p592 = pneg %p280
        %p593 = pneg %p277
        %p594 = pneg %p301
        %p595 = pneg %p298
        %p596 = pneg %p322
        %p597 = pneg %p319
        %p598 = pneg %p343
        %p599 = pneg %p340
        %p600 = pneg %p364
        %p601 = pneg %p361
        %p602 = pneg %p385
        %p603 = pneg %p382
        %p604 = pneg %p406
        %p605 = pneg %p403
        %p606 = scmp.lt.s32.totalorder %s34, 1
        %s607 = scalar_select %p606, %s34, 1
        %s608 = smul.addr %s607, 2
        %s609 = scalar_lea.vmem %s6, %s608
        %p610 = scmp.lt.s32.totalorder %s34, 1
        %s611 = scalar_select %p610, %s34, 1
        %s612 = scalar_lea.vmem %s8, %s611
        %p613 = scmp.eq.s32.totalorder %s34, 0
        // Predicated region
        $region97: #{tpu_custom_call.1} parent=83 // pred_check
          %p614 = pneg %p613
        $region98: #{tpu_custom_call.1} parent=83 // pred_check_branch
          %616 = sbr.rel (%p614) target = $region100
        $region99: #{tpu_custom_call.1} parent=83 // pred_region
          %v617 = vld [vmem:[%s2] sm:$0xff]
          %v618 = vld [vmem:[%s2 + $0x8] sm:$0xff]
          %619 = vst [vmem:[#allocation2] sm:$0xff] %v617
          %620 = vst [vmem:[#allocation2 + $0x8] sm:$0xff] %v618
        $region100: #{tpu_custom_call.1} parent=83 // pred_fallthru
          _
        %v621 = vld [vmem:[#allocation2] sm:$0xff]
        %v622 = vld [vmem:[#allocation2 + $0x8] sm:$0xff]
        %v623 = vld [vmem:[%s3] sm:$0xff]
        %v624 = vld [vmem:[%s3 + $0x8] sm:$0xff]
        %v625 = vld [vmem:[%s3 + $0x10] sm:$0xff]
        %v626 = vld [vmem:[%s0] sm:$0xff]
        %v627 = vld [vmem:[%s0 + $0x8] sm:$0xff]
        %v628 = vld [vmem:[%s0 + $0x10] sm:$0xff]
        %vm629 = vcmask 130048
        %v631 = vsel %vm629, %v626, 0
        %v634 = vsel %vm629, %v627, 0
        %v637 = vsel %vm629, %v628, 0
        %639 = vmatprep.subr.mxu0 0.0
        %640 = vmatpush1.msra.mxu0 %v621
        %641 = vmatprep.subr.mxu0 0.0
        %642 = vmatpush1.msra.mxu0 %v622
        %643 = vmatprep.subr.mxu0 0.0
        %644 = vmatpush1.msra.mxu0 0.0
        %645 = vmatprep.subr.mxu0 0.0
        %646 = vmatpush1.msra.mxu0 0.0
        %647 = vmatprep.subr.mxu0 0.0
        %648 = vmatpush1.msra.mxu0 0.0
        %649 = vmatprep.subr.mxu0 0.0
        %650 = vmatpush1.msra.mxu0 0.0
        %651 = vmatprep.subr.mxu0 0.0
        %652 = vmatpush1.msra.mxu0 0.0
        %653 = vmatprep.subr.mxu0 0.0
        %654 = vmatpush1.msra.mxu0 0.0
        %655 = vmatprep.subr.mxu0 0.0
        %656 = vmatpush1.msra.mxu0 0.0
        %657 = vmatprep.subr.mxu0 0.0
        %658 = vmatpush1.msra.mxu0 0.0
        %659 = vmatprep.subr.mxu0 0.0
        %660 = vmatpush1.msra.mxu0 0.0
        %661 = vmatprep.subr.mxu0 0.0
        %662 = vmatpush1.msra.mxu0 0.0
        %663 = vmatprep.subr.mxu0 0.0
        %664 = vmatpush1.msra.mxu0 0.0
        %665 = vmatprep.subr.mxu0 0.0
        %666 = vmatpush1.msra.mxu0 0.0
        %667 = vmatprep.subr.mxu0 0.0
        %668 = vmatpush1.msra.mxu0 0.0
        %669 = vmatprep.subr.mxu0 0.0
        %670 = vmatpush1.msra.mxu0 0.0
        %671 = vmatprep.subr.mxu0 0.0
        %672 = vmatpush1.msra.mxu0 0.0
        %673 = vmatprep.subr.mxu0 0.0
        %674 = vmatpush1.msra.mxu0 0.0
        %675 = vmatprep.subr.mxu0 0.0
        %676 = vmatpush1.msra.mxu0 0.0
        %677 = vmatprep.subr.mxu0 0.0
        %678 = vmatpush1.msra.mxu0 0.0
        %679 = vmatprep.subr.mxu0 0.0
        %680 = vmatpush1.msra.mxu0 0.0
        %681 = vmatprep.subr.mxu0 0.0
        %682 = vmatpush1.msra.mxu0 0.0
        %683 = vmatprep.subr.mxu0 0.0
        %684 = vmatpush1.msra.mxu0 0.0
        %685 = vmatprep.subr.mxu0 0.0
        %686 = vmatpush1.msra.mxu0 0.0
        %687 = vmatprep.subr.mxu0 0.0
        %688 = vmatpush1.msra.mxu0 0.0
        %689 = vmatprep.subr.mxu0 0.0
        %690 = vmatpush1.msra.mxu0 0.0
        %691 = vmatprep.subr.mxu0 0.0
        %692 = vmatpush1.msra.mxu0 0.0
        %693 = vmatprep.subr.mxu0 0.0
        %694 = vmatpush1.msra.mxu0 0.0
        %695 = vmatprep.subr.mxu0 0.0
        %696 = vmatpush1.msra.mxu0 0.0
        %697 = vmatprep.subr.mxu0 0.0
        %698 = vmatpush1.msra.mxu0 0.0
        %699 = vmatprep.subr.mxu0 0.0
        %700 = vmatpush1.msra.mxu0 0.0
        %701 = vmatprep.subr.mxu0 0.0
        %702 = vmatpush1.msra.mxu0 0.0
        %703 = vmatprep.mubr.f32.mxu0 0.0
        %704 = vmatmul.mubr.f32.gmra.mrb[0].mxu0 %v631
        %v705 = vpop.f32.mrb[0].mxu0
        %v706 = vadd.f32 0.0, %v705
        %v707 = vpop.f32.mrb[0].mxu0
        %708 = vmatprep.mubr.f32.mxu0 0.0
        %709 = vmatmul.mubr.f32.gmra.mrb[0].mxu0 %v634
        %v710 = vpop.f32.mrb[0].mxu0
        %v711 = vadd.f32 0.0, %v710
        %v712 = vpop.f32.mrb[0].mxu0
        %713 = vmatprep.mubr.f32.mxu0 0.0
        %714 = vmatmul.mubr.f32.gmra.mrb[0].mxu0 %v637
        %v715 = vpop.f32.mrb[0].mxu0
        %v716 = vadd.f32 0.0, %v715
        %v717 = vpop.f32.mrb[0].mxu0
        %718 = vdwg.mxu0
        %v719 = vadd.f32 %v623, %v706
        %v720 = vadd.f32 %v624, %v711
        %v721 = vadd.f32 %v625, %v716
        %v722 = vld [vmem:[%s1] sm:$0xff]
        %v723 = vld [vmem:[%s1 + $0x8] sm:$0xff]
        %v724 = vld [vmem:[%s4] sm:$0xff]
        %v725 = vld [vmem:[%s4 + $0x8] sm:$0xff]
        %727 = vset.pattern.permute.xlu0 0
        %728 = vperm.xlu0 %727, %v724
        %v729 = vpop.permute.xlu0 %728
        %732 = vset.pattern.permute.xlu0 0
        %733 = vperm.xlu0 %732, %v725
        %v734 = vpop.permute.xlu0 %733
        %v736 = vmul.f32 %v729, %v621
        %v737 = vmul.f32 %v734, %v622
        %vm738 = vcmask 195584
        %v740 = vsel %vm738, %v722, 0
        %v743 = vsel %vm738, %v723, 0
        %745 = vmatprep.subr.mxu0 0.0
        %746 = vmatpush1.msra.mxu0 %v719
        %747 = vmatprep.subr.mxu0 0.0
        %748 = vmatpush1.msra.mxu0 %v720
        %749 = vmatprep.subr.mxu0 0.0
        %750 = vmatpush1.msra.mxu0 %v721
        %751 = vmatprep.subr.mxu0 0.0
        %752 = vmatpush1.msra.mxu0 0.0
        %753 = vmatprep.subr.mxu0 0.0
        %754 = vmatpush1.msra.mxu0 0.0
        %755 = vmatprep.subr.mxu0 0.0
        %756 = vmatpush1.msra.mxu0 0.0
        %757 = vmatprep.subr.mxu0 0.0
        %758 = vmatpush1.msra.mxu0 0.0
        %759 = vmatprep.subr.mxu0 0.0
        %760 = vmatpush1.msra.mxu0 0.0
        %761 = vmatprep.subr.mxu0 0.0
        %762 = vmatpush1.msra.mxu0 0.0
        %763 = vmatprep.subr.mxu0 0.0
        %764 = vmatpush1.msra.mxu0 0.0
        %765 = vmatprep.subr.mxu0 0.0
        %766 = vmatpush1.msra.mxu0 0.0
        %767 = vmatprep.subr.mxu0 0.0
        %768 = vmatpush1.msra.mxu0 0.0
        %769 = vmatprep.subr.mxu0 0.0
        %770 = vmatpush1.msra.mxu0 0.0
        %771 = vmatprep.subr.mxu0 0.0
        %772 = vmatpush1.msra.mxu0 0.0
        %773 = vmatprep.subr.mxu0 0.0
        %774 = vmatpush1.msra.mxu0 0.0
        %775 = vmatprep.subr.mxu0 0.0
        %776 = vmatpush1.msra.mxu0 0.0
        %777 = vmatprep.subr.mxu0 0.0
        %778 = vmatpush1.msra.mxu0 0.0
        %779 = vmatprep.subr.mxu0 0.0
        %780 = vmatpush1.msra.mxu0 0.0
        %781 = vmatprep.subr.mxu0 0.0
        %782 = vmatpush1.msra.mxu0 0.0
        %783 = vmatprep.subr.mxu0 0.0
        %784 = vmatpush1.msra.mxu0 0.0
        %785 = vmatprep.subr.mxu0 0.0
        %786 = vmatpush1.msra.mxu0 0.0
        %787 = vmatprep.subr.mxu0 0.0
        %788 = vmatpush1.msra.mxu0 0.0
        %789 = vmatprep.subr.mxu0 0.0
        %790 = vmatpush1.msra.mxu0 0.0
        %791 = vmatprep.subr.mxu0 0.0
        %792 = vmatpush1.msra.mxu0 0.0
        %793 = vmatprep.subr.mxu0 0.0
        %794 = vmatpush1.msra.mxu0 0.0
        %795 = vmatprep.subr.mxu0 0.0
        %796 = vmatpush1.msra.mxu0 0.0
        %797 = vmatprep.subr.mxu0 0.0
        %798 = vmatpush1.msra.mxu0 0.0
        %799 = vmatprep.subr.mxu0 0.0
        %800 = vmatpush1.msra.mxu0 0.0
        %801 = vmatprep.subr.mxu0 0.0
        %802 = vmatpush1.msra.mxu0 0.0
        %803 = vmatprep.subr.mxu0 0.0
        %804 = vmatpush1.msra.mxu0 0.0
        %805 = vmatprep.subr.mxu0 0.0
        %806 = vmatpush1.msra.mxu0 0.0
        %807 = vmatprep.subr.mxu0 0.0
        %808 = vmatpush1.msra.mxu0 0.0
        %809 = vmatprep.mubr.f32.mxu0 0.0
        %810 = vmatmul.mubr.f32.gmra.mrb[0].mxu0 %v740
        %v811 = vpop.f32.mrb[0].mxu0
        %v812 = vadd.f32 %v736, %v811
        %v813 = vpop.f32.mrb[0].mxu0
        %814 = vmatprep.mubr.f32.mxu0 0.0
        %815 = vmatmul.mubr.f32.gmra.mrb[0].mxu0 %v743
        %v816 = vpop.f32.mrb[0].mxu0
        %v817 = vadd.f32 %v737, %v816
        %v818 = vpop.f32.mrb[0].mxu0
        %819 = vdwg.mxu0
        %v820 = vld [vmem:[%s537] sm:$0xff]
        %v821 = vld [vmem:[%s537 + $0x8] sm:$0xff]
        %v822 = vld [vmem:[%s537 + $0x10] sm:$0xff]
        %v823 = vld [vmem:[%s537 + $0x18] sm:$0xff]
        %v824 = vld [vmem:[%s537 + $0x20] sm:$0xff]
        %v825 = vld [vmem:[%s537 + $0x28] sm:$0xff]
        %v826 = vld [vmem:[%s537 + $0x30] sm:$0xff]
        %v827 = vld [vmem:[%s537 + $0x38] sm:$0xff]
        %v828 = vld [vmem:[%s537 + $0x40] sm:$0xff]
        %v829 = vld [vmem:[%s537 + $0x48] sm:$0xff]
        %v830 = vld [vmem:[%s537 + $0x50] sm:$0xff]
        %v831 = vld [vmem:[%s537 + $0x58] sm:$0xff]
        %v832 = vld [vmem:[%s537 + $0x60] sm:$0xff]
        %v833 = vld [vmem:[%s537 + $0x68] sm:$0xff]
        %v834 = vld [vmem:[%s537 + $0x70] sm:$0xff]
        %v835 = vld [vmem:[%s537 + $0x78] sm:$0xff]
        %v836 = vld [vmem:[%s537 + $0x80] sm:$0xff]
        %v837 = vld [vmem:[%s537 + $0x88] sm:$0xff]
        %v838 = vld [vmem:[%s537 + $0x90] sm:$0xff]
        %v839 = vld [vmem:[%s537 + $0x98] sm:$0xff]
        %v840 = vld [vmem:[%s537 + $0xa0] sm:$0xff]
        %v841 = vld [vmem:[%s537 + $0xa8] sm:$0xff]
        %v842 = vld [vmem:[%s537 + $0xb0] sm:$0xff]
        %v843 = vld [vmem:[%s537 + $0xb8] sm:$0xff]
        %v844 = vld [vmem:[%s537 + $0xc0] sm:$0xff]
        %v845 = vld [vmem:[%s537 + $0xc8] sm:$0xff]
        %v846 = vld [vmem:[%s537 + $0xd0] sm:$0xff]
        %v847 = vld [vmem:[%s537 + $0xd8] sm:$0xff]
        %v848 = vld [vmem:[%s537 + $0xe0] sm:$0xff]
        %v849 = vld [vmem:[%s537 + $0xe8] sm:$0xff]
        %v850 = vld [vmem:[%s537 + $0xf0] sm:$0xff]
        %v851 = vld [vmem:[%s537 + $0xf8] sm:$0xff]
        %v852 = vld [vmem:[%s609] sm:$0x3]
        %v854 = vlaneseq
        %v855 = vshrl.u32 %v854, 7
        %v856 = vsub.s32 0, %v855
        %v857 = vrot.slane %v852, %v856
        %v858 = vlaneseq
        %v859 = vshrl.u32 %v858, 7
        %v860 = vsub.s32 1, %v859
        %v861 = vrot.slane %v852, %v860
        %864 = vmatprep.subr.mxu0 %v821
        %865 = vmatpush1.msra.mxu0 %v820
        %866 = vmatprep.subr.mxu0 %v823
        %867 = vmatpush1.msra.mxu0 %v822
        %868 = vmatprep.subr.mxu0 %v825
        %869 = vmatpush1.msra.mxu0 %v824
        %870 = vmatprep.subr.mxu0 %v827
        %871 = vmatpush1.msra.mxu0 %v826
        %872 = vmatprep.subr.mxu0 %v829
        %873 = vmatpush1.msra.mxu0 %v828
        %874 = vmatprep.subr.mxu0 %v831
        %875 = vmatpush1.msra.mxu0 %v830
        %876 = vmatprep.subr.mxu0 %v833
        %877 = vmatpush1.msra.mxu0 %v832
        %878 = vmatprep.subr.mxu0 %v835
        %879 = vmatpush1.msra.mxu0 %v834
        %880 = vmatprep.subr.mxu0 %v837
        %881 = vmatpush1.msra.mxu0 %v836
        %882 = vmatprep.subr.mxu0 %v839
        %883 = vmatpush1.msra.mxu0 %v838
        %884 = vmatprep.subr.mxu0 %v841
        %885 = vmatpush1.msra.mxu0 %v840
        %886 = vmatprep.subr.mxu0 %v843
        %887 = vmatpush1.msra.mxu0 %v842
        %888 = vmatprep.subr.mxu0 %v845
        %889 = vmatpush1.msra.mxu0 %v844
        %890 = vmatprep.subr.mxu0 %v847
        %891 = vmatpush1.msra.mxu0 %v846
        %892 = vmatprep.subr.mxu0 %v849
        %893 = vmatpush1.msra.mxu0 %v848
        %894 = vmatprep.subr.mxu0 %v851
        %895 = vmatpush1.msra.mxu0 %v850
        %896 = vmatprep.subr.mxu0 0.0
        %897 = vmatpush1.msra.mxu0 0.0
        %898 = vmatprep.subr.mxu0 0.0
        %899 = vmatpush1.msra.mxu0 0.0
        %900 = vmatprep.subr.mxu0 0.0
        %901 = vmatpush1.msra.mxu0 0.0
        %902 = vmatprep.subr.mxu0 0.0
        %903 = vmatpush1.msra.mxu0 0.0
        %904 = vmatprep.subr.mxu0 0.0
        %905 = vmatpush1.msra.mxu0 0.0
        %906 = vmatprep.subr.mxu0 0.0
        %907 = vmatpush1.msra.mxu0 0.0
        %908 = vmatprep.subr.mxu0 0.0
        %909 = vmatpush1.msra.mxu0 0.0
        %910 = vmatprep.subr.mxu0 0.0
        %911 = vmatpush1.msra.mxu0 0.0
        %912 = vmatprep.subr.mxu0 0.0
        %913 = vmatpush1.msra.mxu0 0.0
        %914 = vmatprep.subr.mxu0 0.0
        %915 = vmatpush1.msra.mxu0 0.0
        %916 = vmatprep.subr.mxu0 0.0
        %917 = vmatpush1.msra.mxu0 0.0
        %918 = vmatprep.subr.mxu0 0.0
        %919 = vmatpush1.msra.mxu0 0.0
        %920 = vmatprep.subr.mxu0 0.0
        %921 = vmatpush1.msra.mxu0 0.0
        %922 = vmatprep.subr.mxu0 0.0
        %923 = vmatpush1.msra.mxu0 0.0
        %924 = vmatprep.subr.mxu0 0.0
        %925 = vmatpush1.msra.mxu0 0.0
        %926 = vmatprep.subr.mxu0 0.0
        %927 = vmatpush1.msra.mxu0 0.0
        %928 = vmatprep.mubr.f32.mxu0 0.0
        %929 = vmatmul.mubr.f32.gmra.mrb[0].mxu0 %v812
        %v930 = vpop.f32.mrb[0].mxu0
        %v931 = vadd.f32 %v857, %v930
        %v932 = vpop.f32.mrb[0].mxu0
        %v933 = vadd.f32 %v861, %v932
        %934 = vmatprep.mubr.f32.mxu0 0.0
        %935 = vmatmul.mubr.f32.gmra.mrb[0].mxu0 %v817
        %v936 = vpop.f32.mrb[0].mxu0
        %v937 = vadd.f32 %v857, %v936
        %v938 = vpop.f32.mrb[0].mxu0
        %v939 = vadd.f32 %v861, %v938
        %940 = vdwg.mxu0
        %v941 = vmax.f32 %v931, 0.0
        %v942 = vmax.f32 %v933, 0.0
        %v943 = vmax.f32 %v937, 0.0
        %v944 = vmax.f32 %v939, 0.0
        %v945 = vld [vmem:[%s546] sm:$0xff]
        %v946 = vld [vmem:[%s546 + $0x8] sm:$0xff]
        %v947 = vld [vmem:[%s546 + $0x10] sm:$0xff]
        %v948 = vld [vmem:[%s546 + $0x18] sm:$0xff]
        %v949 = vld [vmem:[%s546 + $0x20] sm:$0xff]
        %v950 = vld [vmem:[%s546 + $0x28] sm:$0xff]
        %v951 = vld [vmem:[%s546 + $0x30] sm:$0xff]
        %v952 = vld [vmem:[%s546 + $0x38] sm:$0xff]
        %v953 = vld [vmem:[%s546 + $0x40] sm:$0xff]
        %v954 = vld [vmem:[%s546 + $0x48] sm:$0xff]
        %v955 = vld [vmem:[%s546 + $0x50] sm:$0xff]
        %v956 = vld [vmem:[%s546 + $0x58] sm:$0xff]
        %v957 = vld [vmem:[%s546 + $0x60] sm:$0xff]
        %v958 = vld [vmem:[%s546 + $0x68] sm:$0xff]
        %v959 = vld [vmem:[%s546 + $0x70] sm:$0xff]
        %v960 = vld [vmem:[%s546 + $0x78] sm:$0xff]
        %v961 = vld [vmem:[%s546 + $0x80] sm:$0xff]
        %v962 = vld [vmem:[%s546 + $0x88] sm:$0xff]
        %v963 = vld [vmem:[%s546 + $0x90] sm:$0xff]
        %v964 = vld [vmem:[%s546 + $0x98] sm:$0xff]
        %v965 = vld [vmem:[%s546 + $0xa0] sm:$0xff]
        %v966 = vld [vmem:[%s546 + $0xa8] sm:$0xff]
        %v967 = vld [vmem:[%s546 + $0xb0] sm:$0xff]
        %v968 = vld [vmem:[%s546 + $0xb8] sm:$0xff]
        %v969 = vld [vmem:[%s546 + $0xc0] sm:$0xff]
        %v970 = vld [vmem:[%s546 + $0xc8] sm:$0xff]
        %v971 = vld [vmem:[%s546 + $0xd0] sm:$0xff]
        %v972 = vld [vmem:[%s546 + $0xd8] sm:$0xff]
        %v973 = vld [vmem:[%s546 + $0xe0] sm:$0xff]
        %v974 = vld [vmem:[%s546 + $0xe8] sm:$0xff]
        %v975 = vld [vmem:[%s546 + $0xf0] sm:$0xff]
        %v976 = vld [vmem:[%s546 + $0xf8] sm:$0xff]
        %v977 = vld [vmem:[%s612] sm:$0x1]
        %v979 = vlaneseq
        %v980 = vshrl.u32 %v979, 7
        %v981 = vsub.s32 0, %v980
        %v982 = vrot.slane %v977, %v981
        %984 = vmatprep.subr.mxu0 0.0
        %985 = vmatpush1.msra.mxu0 %v945
        %986 = vmatprep.subr.mxu0 0.0
        %987 = vmatpush1.msra.mxu0 %v946
        %988 = vmatprep.subr.mxu0 0.0
        %989 = vmatpush1.msra.mxu0 %v947
        %990 = vmatprep.subr.mxu0 0.0
        %991 = vmatpush1.msra.mxu0 %v948
        %992 = vmatprep.subr.mxu0 0.0
        %993 = vmatpush1.msra.mxu0 %v949
        %994 = vmatprep.subr.mxu0 0.0
        %995 = vmatpush1.msra.mxu0 %v950
        %996 = vmatprep.subr.mxu0 0.0
        %997 = vmatpush1.msra.mxu0 %v951
        %998 = vmatprep.subr.mxu0 0.0
        %999 = vmatpush1.msra.mxu0 %v952
        %1000 = vmatprep.subr.mxu0 0.0
        %1001 = vmatpush1.msra.mxu0 %v953
        %1002 = vmatprep.subr.mxu0 0.0
        %1003 = vmatpush1.msra.mxu0 %v954
        %1004 = vmatprep.subr.mxu0 0.0
        %1005 = vmatpush1.msra.mxu0 %v955
        %1006 = vmatprep.subr.mxu0 0.0
        %1007 = vmatpush1.msra.mxu0 %v956
        %1008 = vmatprep.subr.mxu0 0.0
        %1009 = vmatpush1.msra.mxu0 %v957
        %1010 = vmatprep.subr.mxu0 0.0
        %1011 = vmatpush1.msra.mxu0 %v958
        %1012 = vmatprep.subr.mxu0 0.0
        %1013 = vmatpush1.msra.mxu0 %v959
        %1014 = vmatprep.subr.mxu0 0.0
        %1015 = vmatpush1.msra.mxu0 %v960
        %1016 = vmatprep.subr.mxu0 0.0
        %1017 = vmatpush1.msra.mxu0 %v961
        %1018 = vmatprep.subr.mxu0 0.0
        %1019 = vmatpush1.msra.mxu0 %v962
        %1020 = vmatprep.subr.mxu0 0.0
        %1021 = vmatpush1.msra.mxu0 %v963
        %1022 = vmatprep.subr.mxu0 0.0
        %1023 = vmatpush1.msra.mxu0 %v964
        %1024 = vmatprep.subr.mxu0 0.0
        %1025 = vmatpush1.msra.mxu0 %v965
        %1026 = vmatprep.subr.mxu0 0.0
        %1027 = vmatpush1.msra.mxu0 %v966
        %1028 = vmatprep.subr.mxu0 0.0
        %1029 = vmatpush1.msra.mxu0 %v967
        %1030 = vmatprep.subr.mxu0 0.0
        %1031 = vmatpush1.msra.mxu0 %v968
        %1032 = vmatprep.subr.mxu0 0.0
        %1033 = vmatpush1.msra.mxu0 %v969
        %1034 = vmatprep.subr.mxu0 0.0
        %1035 = vmatpush1.msra.mxu0 %v970
        %1036 = vmatprep.subr.mxu0 0.0
        %1037 = vmatpush1.msra.mxu0 %v971
        %1038 = vmatprep.subr.mxu0 0.0
        %1039 = vmatpush1.msra.mxu0 %v972
        %1040 = vmatprep.subr.mxu0 0.0
        %1041 = vmatpush1.msra.mxu0 %v973
        %1042 = vmatprep.subr.mxu0 0.0
        %1043 = vmatpush1.msra.mxu0 %v974
        %1044 = vmatprep.subr.mxu0 0.0
        %1045 = vmatpush1.msra.mxu0 %v975
        %1046 = vmatprep.subr.mxu0 0.0
        %1047 = vmatpush1.msra.mxu0 %v976
        %1048 = vmatprep.mubr.f32.mxu0 %v942
        %1049 = vmatmul.mubr.f32.gmra.mrb[0].mxu0 %v941
        %v1050 = vpop.f32.mrb[0].mxu0
        %v1051 = vadd.f32 %v982, %v1050
        %v1052 = vpop.f32.mrb[0].mxu0
        %1053 = vmatprep.mubr.f32.mxu0 %v944
        %1054 = vmatmul.mubr.f32.gmra.mrb[0].mxu0 %v943
        %v1055 = vpop.f32.mrb[0].mxu0
        %v1056 = vadd.f32 %v982, %v1055
        %v1057 = vpop.f32.mrb[0].mxu0
        %1058 = vdwg.mxu0
        %v1059 = vmax.f32 %v1051, 0.0
        %v1060 = vmax.f32 %v1056, 0.0
        %1061 = vst [vmem:[#allocation2] sm:$0xff] %v1059
        %1062 = vst [vmem:[#allocation2 + $0x8] sm:$0xff] %v1060
        %p1063 = scmp.eq.s32.totalorder %s34, 1
        // Predicated region
        $region101: #{tpu_custom_call.1} parent=83 // pred_check
          %p1064 = pneg %p1063
        $region102: #{tpu_custom_call.1} parent=83 // pred_check_branch
          %1066 = sbr.rel (%p1064) target = $region104
        $region103: #{tpu_custom_call.1} parent=83 // pred_region
          %v1067 = vld [vmem:[%s9] sm:$0x3]
          %v1069 = vsel %vm629, %v1067, 0
          %1071 = vmatprep.subr.mxu0 0.0
          %1072 = vmatpush1.msra.mxu0 %v1059
          %1073 = vmatprep.subr.mxu0 0.0
          %1074 = vmatpush1.msra.mxu0 %v1060
          %1075 = vmatprep.subr.mxu0 0.0
          %1076 = vmatpush1.msra.mxu0 0.0
          %1077 = vmatprep.subr.mxu0 0.0
          %1078 = vmatpush1.msra.mxu0 0.0
          %1079 = vmatprep.subr.mxu0 0.0
          %1080 = vmatpush1.msra.mxu0 0.0
          %1081 = vmatprep.subr.mxu0 0.0
          %1082 = vmatpush1.msra.mxu0 0.0
          %1083 = vmatprep.subr.mxu0 0.0
          %1084 = vmatpush1.msra.mxu0 0.0
          %1085 = vmatprep.subr.mxu0 0.0
          %1086 = vmatpush1.msra.mxu0 0.0
          %1087 = vmatprep.subr.mxu0 0.0
          %1088 = vmatpush1.msra.mxu0 0.0
          %1089 = vmatprep.subr.mxu0 0.0
          %1090 = vmatpush1.msra.mxu0 0.0
          %1091 = vmatprep.subr.mxu0 0.0
          %1092 = vmatpush1.msra.mxu0 0.0
          %1093 = vmatprep.subr.mxu0 0.0
          %1094 = vmatpush1.msra.mxu0 0.0
          %1095 = vmatprep.subr.mxu0 0.0
          %1096 = vmatpush1.msra.mxu0 0.0
          %1097 = vmatprep.subr.mxu0 0.0
          %1098 = vmatpush1.msra.mxu0 0.0
          %1099 = vmatprep.subr.mxu0 0.0
          %1100 = vmatpush1.msra.mxu0 0.0
          %1101 = vmatprep.subr.mxu0 0.0
          %1102 = vmatpush1.msra.mxu0 0.0
          %1103 = vmatprep.subr.mxu0 0.0
          %1104 = vmatpush1.msra.mxu0 0.0
          %1105 = vmatprep.subr.mxu0 0.0
          %1106 = vmatpush1.msra.mxu0 0.0
          %1107 = vmatprep.subr.mxu0 0.0
          %1108 = vmatpush1.msra.mxu0 0.0
          %1109 = vmatprep.subr.mxu0 0.0
          %1110 = vmatpush1.msra.mxu0 0.0
          %1111 = vmatprep.subr.mxu0 0.0
          %1112 = vmatpush1.msra.mxu0 0.0
          %1113 = vmatprep.subr.mxu0 0.0
          %1114 = vmatpush1.msra.mxu0 0.0
          %1115 = vmatprep.subr.mxu0 0.0
          %1116 = vmatpush1.msra.mxu0 0.0
          %1117 = vmatprep.subr.mxu0 0.0
          %1118 = vmatpush1.msra.mxu0 0.0
          %1119 = vmatprep.subr.mxu0 0.0
          %1120 = vmatpush1.msra.mxu0 0.0
          %1121 = vmatprep.subr.mxu0 0.0
          %1122 = vmatpush1.msra.mxu0 0.0
          %1123 = vmatprep.subr.mxu0 0.0
          %1124 = vmatpush1.msra.mxu0 0.0
          %1125 = vmatprep.subr.mxu0 0.0
          %1126 = vmatpush1.msra.mxu0 0.0
          %1127 = vmatprep.subr.mxu0 0.0
          %1128 = vmatpush1.msra.mxu0 0.0
          %1129 = vmatprep.subr.mxu0 0.0
          %1130 = vmatpush1.msra.mxu0 0.0
          %1131 = vmatprep.subr.mxu0 0.0
          %1132 = vmatpush1.msra.mxu0 0.0
          %1133 = vmatprep.subr.mxu0 0.0
          %1134 = vmatpush1.msra.mxu0 0.0
          %1135 = vmatprep.mubr.f32.mxu0 0.0
          %1136 = vmatmul.mubr.f32.gmra.mrb[0].mxu0 %v1069
          %v1137 = vpop.f32.mrb[0].mxu0
          %v1138 = vadd.f32 0.0, %v1137
          %v1139 = vpop.f32.mrb[0].mxu0
          %1140 = vdwg.mxu0
          %v1141 = vld [vmem:[%s10] sm:$0xff]
          %v1142 = vld [vmem:[%s10 + $0x8] sm:$0xff]
          %v1143 = vld [vmem:[%s10 + $0x10] sm:$0xff]
          %v1144 = vld [vmem:[%s10 + $0x18] sm:$0xff]
          %v1145 = vld [vmem:[%s10 + $0x20] sm:$0xff]
          %v1146 = vld [vmem:[%s10 + $0x28] sm:$0xff]
          %v1147 = vld [vmem:[%s10 + $0x30] sm:$0xff]
          %v1148 = vld [vmem:[%s10 + $0x38] sm:$0xff]
          %v1149 = vld [vmem:[%s10 + $0x40] sm:$0xff]
          %v1150 = vld [vmem:[%s10 + $0x48] sm:$0xff]
          %v1151 = vld [vmem:[%s10 + $0x50] sm:$0xff]
          %v1152 = vld [vmem:[%s10 + $0x58] sm:$0xff]
          %v1153 = vld [vmem:[%s10 + $0x60] sm:$0xff]
          %v1154 = vld [vmem:[%s10 + $0x68] sm:$0xff]
          %v1155 = vld [vmem:[%s10 + $0x70] sm:$0xff]
          %v1156 = vld [vmem:[%s10 + $0x78] sm:$0xff]
          %v1157 = vld [vmem:[%s11] sm:$0x1]
          %v1159 = vlaneseq
          %v1160 = vshrl.u32 %v1159, 7
          %v1161 = vsub.s32 0, %v1160
          %v1162 = vrot.slane %v1157, %v1161
          %1164 = vmatprep.subr.mxu0 0.0
          %1165 = vmatpush1.msra.mxu0 %v1141
          %1166 = vmatprep.subr.mxu0 0.0
          %1167 = vmatpush1.msra.mxu0 %v1142
          %1168 = vmatprep.subr.mxu0 0.0
          %1169 = vmatpush1.msra.mxu0 %v1143
          %1170 = vmatprep.subr.mxu0 0.0
          %1171 = vmatpush1.msra.mxu0 %v1144
          %1172 = vmatprep.subr.mxu0 0.0
          %1173 = vmatpush1.msra.mxu0 %v1145
          %1174 = vmatprep.subr.mxu0 0.0
          %1175 = vmatpush1.msra.mxu0 %v1146
          %1176 = vmatprep.subr.mxu0 0.0
          %1177 = vmatpush1.msra.mxu0 %v1147
          %1178 = vmatprep.subr.mxu0 0.0
          %1179 = vmatpush1.msra.mxu0 %v1148
          %1180 = vmatprep.subr.mxu0 0.0
          %1181 = vmatpush1.msra.mxu0 %v1149
          %1182 = vmatprep.subr.mxu0 0.0
          %1183 = vmatpush1.msra.mxu0 %v1150
          %1184 = vmatprep.subr.mxu0 0.0
          %1185 = vmatpush1.msra.mxu0 %v1151
          %1186 = vmatprep.subr.mxu0 0.0
          %1187 = vmatpush1.msra.mxu0 %v1152
          %1188 = vmatprep.subr.mxu0 0.0
          %1189 = vmatpush1.msra.mxu0 %v1153
          %1190 = vmatprep.subr.mxu0 0.0
          %1191 = vmatpush1.msra.mxu0 %v1154
          %1192 = vmatprep.subr.mxu0 0.0
          %1193 = vmatpush1.msra.mxu0 %v1155
          %1194 = vmatprep.subr.mxu0 0.0
          %1195 = vmatpush1.msra.mxu0 %v1156
          %1196 = vmatprep.subr.mxu0 0.0
          %1197 = vmatpush1.msra.mxu0 0.0
          %1198 = vmatprep.subr.mxu0 0.0
          %1199 = vmatpush1.msra.mxu0 0.0
          %1200 = vmatprep.subr.mxu0 0.0
          %1201 = vmatpush1.msra.mxu0 0.0
          %1202 = vmatprep.subr.mxu0 0.0
          %1203 = vmatpush1.msra.mxu0 0.0
          %1204 = vmatprep.subr.mxu0 0.0
          %1205 = vmatpush1.msra.mxu0 0.0
          %1206 = vmatprep.subr.mxu0 0.0
          %1207 = vmatpush1.msra.mxu0 0.0
          %1208 = vmatprep.subr.mxu0 0.0
          %1209 = vmatpush1.msra.mxu0 0.0
          %1210 = vmatprep.subr.mxu0 0.0
          %1211 = vmatpush1.msra.mxu0 0.0
          %1212 = vmatprep.subr.mxu0 0.0
          %1213 = vmatpush1.msra.mxu0 0.0
          %1214 = vmatprep.subr.mxu0 0.0
          %1215 = vmatpush1.msra.mxu0 0.0
          %1216 = vmatprep.subr.mxu0 0.0
          %1217 = vmatpush1.msra.mxu0 0.0
          %1218 = vmatprep.subr.mxu0 0.0
          %1219 = vmatpush1.msra.mxu0 0.0
          %1220 = vmatprep.subr.mxu0 0.0
          %1221 = vmatpush1.msra.mxu0 0.0
          %1222 = vmatprep.subr.mxu0 0.0
          %1223 = vmatpush1.msra.mxu0 0.0
          %1224 = vmatprep.subr.mxu0 0.0
          %1225 = vmatpush1.msra.mxu0 0.0
          %1226 = vmatprep.subr.mxu0 0.0
          %1227 = vmatpush1.msra.mxu0 0.0
          %1228 = vmatprep.mubr.f32.mxu0 0.0
          %1229 = vmatmul.mubr.f32.gmra.mrb[0].mxu0 %v1138
          %v1230 = vpop.f32.mrb[0].mxu0
          %v1231 = vadd.f32 %v1162, %v1230
          %v1232 = vpop.f32.mrb[0].mxu0
          %1233 = vdwg.mxu0
          %v1234 = vmax.f32 %v1231, 0.0
          %v1235 = vld [vmem:[#allocation8] sm:$0xff]
          %v1236 = vld [vmem:[#allocation8 + $0x8] sm:$0xff]
          %v1237 = vld [vmem:[#allocation8 + $0x10] sm:$0xff]
          %v1238 = vld [vmem:[#allocation8 + $0x18] sm:$0xff]
          %v1239 = vld [vmem:[#allocation8 + $0x20] sm:$0xff]
          %v1240 = vld [vmem:[#allocation8 + $0x28] sm:$0xff]
          %v1241 = vld [vmem:[#allocation8 + $0x30] sm:$0xff]
          %v1242 = vld [vmem:[#allocation8 + $0x38] sm:$0xff]
          %v1243 = vld [vmem:[#allocation8 + $0x40] sm:$0xff]
          %v1244 = vld [vmem:[#allocation8 + $0x48] sm:$0xff]
          %v1245 = vld [vmem:[#allocation8 + $0x50] sm:$0xff]
          %v1246 = vld [vmem:[#allocation8 + $0x58] sm:$0xff]
          %v1247 = vld [vmem:[#allocation8 + $0x60] sm:$0xff]
          %v1248 = vld [vmem:[#allocation8 + $0x68] sm:$0xff]
          %v1249 = vld [vmem:[#allocation8 + $0x70] sm:$0xff]
          %v1250 = vld [vmem:[#allocation8 + $0x78] sm:$0xff]
          %v1251 = vld [vmem:[%s13] sm:$0x1]
          %v1253 = vlaneseq
          %v1254 = vshrl.u32 %v1253, 7
          %v1255 = vsub.s32 0, %v1254
          %v1256 = vrot.slane %v1251, %v1255
          %1258 = vmatprep.subr.mxu0 0.0
          %1259 = vmatpush1.msra.mxu0 %v1235
          %1260 = vmatprep.subr.mxu0 0.0
          %1261 = vmatpush1.msra.mxu0 %v1236
          %1262 = vmatprep.subr.mxu0 0.0
          %1263 = vmatpush1.msra.mxu0 %v1237
          %1264 = vmatprep.subr.mxu0 0.0
          %1265 = vmatpush1.msra.mxu0 %v1238
          %1266 = vmatprep.subr.mxu0 0.0
          %1267 = vmatpush1.msra.mxu0 %v1239
          %1268 = vmatprep.subr.mxu0 0.0
          %1269 = vmatpush1.msra.mxu0 %v1240
          %1270 = vmatprep.subr.mxu0 0.0
          %1271 = vmatpush1.msra.mxu0 %v1241
          %1272 = vmatprep.subr.mxu0 0.0
          %1273 = vmatpush1.msra.mxu0 %v1242
          %1274 = vmatprep.subr.mxu0 0.0
          %1275 = vmatpush1.msra.mxu0 %v1243
          %1276 = vmatprep.subr.mxu0 0.0
          %1277 = vmatpush1.msra.mxu0 %v1244
          %1278 = vmatprep.subr.mxu0 0.0
          %1279 = vmatpush1.msra.mxu0 %v1245
          %1280 = vmatprep.subr.mxu0 0.0
          %1281 = vmatpush1.msra.mxu0 %v1246
          %1282 = vmatprep.subr.mxu0 0.0
          %1283 = vmatpush1.msra.mxu0 %v1247
          %1284 = vmatprep.subr.mxu0 0.0
          %1285 = vmatpush1.msra.mxu0 %v1248
          %1286 = vmatprep.subr.mxu0 0.0
          %1287 = vmatpush1.msra.mxu0 %v1249
          %1288 = vmatprep.subr.mxu0 0.0
          %1289 = vmatpush1.msra.mxu0 %v1250
          %1290 = vmatprep.subr.mxu0 0.0
          %1291 = vmatpush1.msra.mxu0 0.0
          %1292 = vmatprep.subr.mxu0 0.0
          %1293 = vmatpush1.msra.mxu0 0.0
          %1294 = vmatprep.subr.mxu0 0.0
          %1295 = vmatpush1.msra.mxu0 0.0
          %1296 = vmatprep.subr.mxu0 0.0
          %1297 = vmatpush1.msra.mxu0 0.0
          %1298 = vmatprep.subr.mxu0 0.0
          %1299 = vmatpush1.msra.mxu0 0.0
          %1300 = vmatprep.subr.mxu0 0.0
          %1301 = vmatpush1.msra.mxu0 0.0
          %1302 = vmatprep.subr.mxu0 0.0
          %1303 = vmatpush1.msra.mxu0 0.0
          %1304 = vmatprep.subr.mxu0 0.0
          %1305 = vmatpush1.msra.mxu0 0.0
          %1306 = vmatprep.subr.mxu0 0.0
          %1307 = vmatpush1.msra.mxu0 0.0
          %1308 = vmatprep.subr.mxu0 0.0
          %1309 = vmatpush1.msra.mxu0 0.0
          %1310 = vmatprep.subr.mxu0 0.0
          %1311 = vmatpush1.msra.mxu0 0.0
          %1312 = vmatprep.subr.mxu0 0.0
          %1313 = vmatpush1.msra.mxu0 0.0
          %1314 = vmatprep.subr.mxu0 0.0
          %1315 = vmatpush1.msra.mxu0 0.0
          %1316 = vmatprep.subr.mxu0 0.0
          %1317 = vmatpush1.msra.mxu0 0.0
          %1318 = vmatprep.subr.mxu0 0.0
          %1319 = vmatpush1.msra.mxu0 0.0
          %1320 = vmatprep.subr.mxu0 0.0
          %1321 = vmatpush1.msra.mxu0 0.0
          %1322 = vmatprep.mubr.f32.mxu0 0.0
          %1323 = vmatmul.mubr.f32.gmra.mrb[0].mxu0 %v1234
          %v1324 = vpop.f32.mrb[0].mxu0
          %v1325 = vadd.f32 %v1256, %v1324
          %v1326 = vpop.f32.mrb[0].mxu0
          %1327 = vdwg.mxu0
          %v1328 = vmax.f32 %v1325, 0.0
          %v1329 = vld [vmem:[%s14] sm:$0xff]
          %v1330 = vld [vmem:[%s14 + $0x8] sm:$0xff]
          %v1331 = vld [vmem:[%s14 + $0x10] sm:$0xff]
          %v1332 = vld [vmem:[%s14 + $0x18] sm:$0xff]
          %v1333 = vld [vmem:[%s14 + $0x20] sm:$0xff]
          %v1334 = vld [vmem:[%s14 + $0x28] sm:$0xff]
          %v1335 = vld [vmem:[%s14 + $0x30] sm:$0xff]
          %v1336 = vld [vmem:[%s14 + $0x38] sm:$0xff]
          %v1337 = vld [vmem:[%s14 + $0x40] sm:$0xff]
          %v1338 = vld [vmem:[%s14 + $0x48] sm:$0xff]
          %v1339 = vld [vmem:[%s14 + $0x50] sm:$0xff]
          %v1340 = vld [vmem:[%s14 + $0x58] sm:$0xff]
          %v1341 = vld [vmem:[%s14 + $0x60] sm:$0xff]
          %v1342 = vld [vmem:[%s14 + $0x68] sm:$0xff]
          %v1343 = vld [vmem:[%s14 + $0x70] sm:$0xff]
          %v1344 = vld [vmem:[%s14 + $0x78] sm:$0xff]
          %v1345 = vld [vmem:[%s15] sm:$0x1]
          %v1347 = vlaneseq
          %v1348 = vshrl.u32 %v1347, 7
          %v1349 = vsub.s32 0, %v1348
          %v1350 = vrot.slane %v1345, %v1349
          %1352 = vmatprep.subr.mxu0 0.0
          %1353 = vmatpush1.msra.mxu0 %v1329
          %1354 = vmatprep.subr.mxu0 0.0
          %1355 = vmatpush1.msra.mxu0 %v1330
          %1356 = vmatprep.subr.mxu0 0.0
          %1357 = vmatpush1.msra.mxu0 %v1331
          %1358 = vmatprep.subr.mxu0 0.0
          %1359 = vmatpush1.msra.mxu0 %v1332
          %1360 = vmatprep.subr.mxu0 0.0
          %1361 = vmatpush1.msra.mxu0 %v1333
          %1362 = vmatprep.subr.mxu0 0.0
          %1363 = vmatpush1.msra.mxu0 %v1334
          %1364 = vmatprep.subr.mxu0 0.0
          %1365 = vmatpush1.msra.mxu0 %v1335
          %1366 = vmatprep.subr.mxu0 0.0
          %1367 = vmatpush1.msra.mxu0 %v1336
          %1368 = vmatprep.subr.mxu0 0.0
          %1369 = vmatpush1.msra.mxu0 %v1337
          %1370 = vmatprep.subr.mxu0 0.0
          %1371 = vmatpush1.msra.mxu0 %v1338
          %1372 = vmatprep.subr.mxu0 0.0
          %1373 = vmatpush1.msra.mxu0 %v1339
          %1374 = vmatprep.subr.mxu0 0.0
          %1375 = vmatpush1.msra.mxu0 %v1340
          %1376 = vmatprep.subr.mxu0 0.0
          %1377 = vmatpush1.msra.mxu0 %v1341
          %1378 = vmatprep.subr.mxu0 0.0
          %1379 = vmatpush1.msra.mxu0 %v1342
          %1380 = vmatprep.subr.mxu0 0.0
          %1381 = vmatpush1.msra.mxu0 %v1343
          %1382 = vmatprep.subr.mxu0 0.0
          %1383 = vmatpush1.msra.mxu0 %v1344
          %1384 = vmatprep.subr.mxu0 0.0
          %1385 = vmatpush1.msra.mxu0 0.0
          %1386 = vmatprep.subr.mxu0 0.0
          %1387 = vmatpush1.msra.mxu0 0.0
          %1388 = vmatprep.subr.mxu0 0.0
          %1389 = vmatpush1.msra.mxu0 0.0
          %1390 = vmatprep.subr.mxu0 0.0
          %1391 = vmatpush1.msra.mxu0 0.0
          %1392 = vmatprep.subr.mxu0 0.0
          %1393 = vmatpush1.msra.mxu0 0.0
          %1394 = vmatprep.subr.mxu0 0.0
          %1395 = vmatpush1.msra.mxu0 0.0
          %1396 = vmatprep.subr.mxu0 0.0
          %1397 = vmatpush1.msra.mxu0 0.0
          %1398 = vmatprep.subr.mxu0 0.0
          %1399 = vmatpush1.msra.mxu0 0.0
          %1400 = vmatprep.subr.mxu0 0.0
          %1401 = vmatpush1.msra.mxu0 0.0
          %1402 = vmatprep.subr.mxu0 0.0
          %1403 = vmatpush1.msra.mxu0 0.0
          %1404 = vmatprep.subr.mxu0 0.0
          %1405 = vmatpush1.msra.mxu0 0.0
          %1406 = vmatprep.subr.mxu0 0.0
          %1407 = vmatpush1.msra.mxu0 0.0
          %1408 = vmatprep.subr.mxu0 0.0
          %1409 = vmatpush1.msra.mxu0 0.0
          %1410 = vmatprep.subr.mxu0 0.0
          %1411 = vmatpush1.msra.mxu0 0.0
          %1412 = vmatprep.subr.mxu0 0.0
          %1413 = vmatpush1.msra.mxu0 0.0
          %1414 = vmatprep.subr.mxu0 0.0
          %1415 = vmatpush1.msra.mxu0 0.0
          %1416 = vmatprep.mubr.f32.mxu0 0.0
          %1417 = vmatmul.mubr.f32.gmra.mrb[0].mxu0 %v1328
          %v1418 = vpop.f32.mrb[0].mxu0
          %v1419 = vadd.f32 %v1350, %v1418
          %v1420 = vpop.f32.mrb[0].mxu0
          %1421 = vdwg.mxu0
          %vm1422 = vcmask 58368
          %1423 = vst.msk [vmem:[#allocation9] sm:$0x3] %vm1422, %v1419
        $region104: #{tpu_custom_call.1} parent=83 // pred_fallthru
          _
        // Predicated region
        $region105: #{tpu_custom_call.1} parent=83 // pred_check
          %p1424 = pneg %p403
        $region106: #{tpu_custom_call.1} parent=83 // pred_check_branch
          %1426 = sbr.rel (%p1424) target = $region108
        $region107: #{tpu_custom_call.1} parent=83 // pred_region
          %s1428 = ssub.s32 32, 32
          %1429 = vsyncadd [#allocation5], %s1428
          %s1431 = sshll.u32 [#allocation9], 4
          %s1432 = int_to_ptr.vmem [resolvable:$true] %s1431
          %1434 = dma.vmem_to_hbm [thread:$0]  %s1432, 32, %s16, [#allocation5]
        $region108: #{tpu_custom_call.1} parent=83 // pred_fallthru
          _
        // Predicated region
        $region109: #{tpu_custom_call.1} parent=83 // pred_check
          %p1435 = pneg %p403
        $region110: #{tpu_custom_call.1} parent=83 // pred_check_branch
          %1437 = sbr.rel (%p1435) target = $region112
        $region111: #{tpu_custom_call.1} parent=83 // pred_region
          %1438 = dma.done [#allocation5], 32
        $region112: #{tpu_custom_call.1} parent=83 // pred_fallthru
          _
      $region84: #{tpu_custom_call.1} parent=5 // pred_fallthru
        _
      %p1439 = scmp.le.s32.totalorder 2, %s29
      // Predicated region
      $region113: #{tpu_custom_call.1} parent=5 // pred_check
        %p1440 = pneg %p1439
      $region114: #{tpu_custom_call.1} parent=5 // pred_check_branch
        %1442 = sbr.rel (%p1440) target = $region116
      $region115: #{tpu_custom_call.1} parent=5 // pred_region
        %s1443 = ssub.s32 %s29, 2
      $region116: #{tpu_custom_call.1} parent=5 // pred_fallthru
        _
    $region6: #{tpu_custom_call.1} parent=1 // loop_footer
      %s33 = sadd.s32 1, %s29
    $region7: #{tpu_custom_call.1} parent=1 // loop_footer_branch
      %28 = sbr.rel target = $region3
    $region8: #{tpu_custom_call.1} parent=1 // loop_exit
      _
    %1444 = vsyncpa [#allocation4], 1
    %s1445 = scalar_lea.sflag [#allocation4], 1
    %1446 = vsyncpa %s1445, 1
    %1447 = vsyncpa [#allocation7], 1
    %s1448 = scalar_lea.sflag [#allocation7], 1
    %1449 = vsyncpa %s1448, 1
    %1450 = vsyncpa [#allocation5], 1
    %s1451 = scalar_lea.sflag [#allocation5], 1
    %1452 = vsyncpa %s1451, 1

</llo_original>
